<compile_context>
chip_gen: v6e
topology: v6e:2x2x1
jax: 0.10.0
libtpu: 0.0.40
codegen_flags: <defaults>
</compile_context>

<pallas_src>
import numpy as np
import jax
import jax.numpy as jnp
from jax.experimental import pallas as pl
from jax.experimental.pallas import tpu as pltpu

H_IMG, W_IMG, KH, KW, C_OUT = 10, 4, 3, 3, 32
N_PIX = H_IMG * W_IMG                                  # 40
FC1_IN, FC1_OUT, FC2_OUT = C_OUT * N_PIX, 64, 2        # 1280, 64, 2


# ----------------------------- fused Pallas kernel ------------------------- #

def _fused_kernel(x_ref, wc_ref, bc_ref, w1_ref, b1_ref, w2_ref, b2_ref, o_ref):
    # x_ref : (tb, 40)      raw flattened images
    # wc_ref: (40, 1280)    conv expressed as dense matmul (feature = (h*4+w)*32 + c)
    # bc_ref: (1, 1280)     conv bias tiled to the same feature order
    # w1_ref: (1280, 64)    fc1 weight, input axis permuted to (h*4+w)*32 + c
    # w2_ref: (64, 2)
    conv = jnp.dot(x_ref[...], wc_ref[...], preferred_element_type=jnp.float32)
    conv = jnp.maximum(conv + bc_ref[...], 0.0)                       # (tb, 1280), stays in VMEM
    h1 = jnp.dot(conv, w1_ref[...], preferred_element_type=jnp.float32) + b1_ref[...]
    h1 = jnp.maximum(h1, 0.0)                                         # (tb, 64)
    o_ref[...] = jnp.dot(h1, w2_ref[...], preferred_element_type=jnp.float32) + b2_ref[...]


def _pick_block_b(batch):
    # >=2 grid steps when possible (engages both v7x TensorCores; free on v5e/v6e),
    # 8-aligned sublane tiles, capped at 512 rows (per-step activations ~2.6 MB f32,
    # far under the scoped VMEM limit on every generation including v7x).
    if batch >= 16 and batch % 8 == 0:
        tb = min(512, (batch // 2) // 8 * 8)
        if tb >= 8 and batch % tb == 0:
            return tb
    return batch           # single full-batch block (always layout-legal)


def fused_forward(x2d, prep):
    B = x2d.shape[0]
    tb = _pick_block_b(B)
    grid = (pl.cdiv(B, tb),)
    return pl.pallas_call(
        _fused_kernel,
        out_shape=jax.ShapeDtypeStruct((B, FC2_OUT), jnp.float32),
        grid_spec=pltpu.PrefetchScalarGridSpec(
            num_scalar_prefetch=0,
            grid=grid,
            in_specs=[
                pl.BlockSpec((tb, N_PIX), lambda i: (i, 0)),         # x tile
                pl.BlockSpec((N_PIX, FC1_IN), lambda i: (0, 0)),     # conv-as-matmul weight
                pl.BlockSpec((1, FC1_IN), lambda i: (0, 0)),         # conv bias (tiled)
                pl.BlockSpec((FC1_IN, FC1_OUT), lambda i: (0, 0)),   # fc1 weight (permuted)
                pl.BlockSpec((1, FC1_OUT), lambda i: (0, 0)),        # fc1 bias
                pl.BlockSpec((FC1_OUT, FC2_OUT), lambda i: (0, 0)),  # fc2 weight (transposed)
                pl.BlockSpec((1, FC2_OUT), lambda i: (0, 0)),        # fc2 bias
            ],
            out_specs=pl.BlockSpec((tb, FC2_OUT), lambda i: (i, 0)),
        ),
        compiler_params=pltpu.CompilerParams(
            dimension_semantics=("parallel",)),
    )(x2d, prep["w_conv"], prep["b_conv"], prep["w1"], prep["b1"], prep["w2"], prep["b2"])


@jax.jit
def cnn2d_forward(prep, x):
    # mirrors x.view(-1, 1, 10, 4); the kernel consumes the flat (B, 40) layout directly.
    return fused_forward(x.reshape(-1, N_PIX), prep)


# ----------------------------- one-time param repack ----------------------- #

def init_params(key):
    # PyTorch-layout parameters (OIHW conv weight, (out,in) linear weights).
    ks = jax.random.split(key, 6)
    return {
        "conv_w": 0.10 * jax.random.normal(ks[0], (C_OUT, 1, KH, KW), jnp.float32),
        "conv_b": 0.10 * jax.random.normal(ks[1], (C_OUT,), jnp.float32),
        "fc1_w": 0.05 * jax.random.normal(ks[2], (FC1_OUT, FC1_IN), jnp.float32),
        "fc1_b": 0.10 * jax.random.normal(ks[3], (FC1_OUT,), jnp.float32),
        "fc2_w": 0.10 * jax.random.normal(ks[4], (FC2_OUT, FC1_OUT), jnp.float32),
        "fc2_b": 0.10 * jax.random.normal(ks[5], (FC2_OUT,), jnp.float32),
    }


def prepare_params(params):
    """Host-side, once: repack PyTorch-layout weights into the kernel's layouts so the
    per-call forward contains no weight reshapes/transposes at all."""
    conv_w = np.asarray(jax.device_get(params["conv_w"])).reshape(C_OUT, KH, KW)

    # Fold im2col + zero padding of the 3x3 'same' conv into a dense (40, 1280) matrix:
    #   conv_out[b, (h*4+w)*32 + c] = sum_{h',w'} x[b, h'*4+w'] * Wc[h'*4+w', (h*4+w)*32+c]
    w_conv = np.zeros((N_PIX, FC1_IN), np.float32)
    for h in range(H_IMG):
        for w in range(W_IMG):
            col0 = (h * W_IMG + w) * C_OUT
            for kh in range(KH):
                for kw in range(KW):
                    hp, wp = h - 1 + kh, w - 1 + kw
                    if 0 <= hp < H_IMG and 0 <= wp < W_IMG:
                        w_conv[hp * W_IMG + wp, col0:col0 + C_OUT] = conv_w[:, kh, kw]

    # fc1 weight: PyTorch flatten order is c*40 + h*4 + w; our feature order is (h*4+w)*32 + c.
    w1 = jnp.transpose(params["fc1_w"].reshape(FC1_OUT, C_OUT, H_IMG, W_IMG),
                       (2, 3, 1, 0)).reshape(FC1_IN, FC1_OUT)

    return {
        "w_conv": jnp.asarray(w_conv),                                   # (40, 1280)
        "b_conv": jnp.tile(params["conv_b"], N_PIX).reshape(1, FC1_IN),  # (1, 1280)
        "w1": w1,                                                        # (1280, 64)
        "b1": params["fc1_b"].reshape(1, FC1_OUT),                       # (1, 64)
        "w2": params["fc2_w"].T,                                         # (64, 2)
        "b2": params["fc2_b"].reshape(1, FC2_OUT),                       # (1, 2)
    }


# ----------------------------- pure-JAX reference --------------------------- #

def ref_forward(params, x):
    # mirrors the PyTorch module exactly (NCHW conv, PyTorch flatten order).
    xi = x.reshape(-1, 1, H_IMG, W_IMG)
    conv = jax.lax.conv_general_dilated(
        xi, params["conv_w"], window_strides=(1, 1), padding=((1, 1), (1, 1)),
        dimension_numbers=("NCHW", "OIHW", "NCHW"))
    conv = jnp.maximum(conv + params["conv_b"][None, :, None, None], 0.0)
    flat = conv.reshape(conv.shape[0], -1)
    h = jnp.maximum(flat @ params["fc1_w"].T + params["fc1_b"], 0.0)
    return h @ params["fc2_w"].T + params["fc2_b"]


if __name__ == "__main__":
    key = jax.random.PRNGKey(0)
    pkey, xkey = jax.random.split(key)
    params = init_params(pkey)
    prep = prepare_params(params)          # one-time repack, hoisted out of the hot path

    B = 16
    x = jax.random.normal(xkey, (B, N_PIX), jnp.float32)   # viewed as (16, 1, 10, 4)

    out = jax.block_until_ready(cnn2d_forward(prep, x))
    ref = ref_forward(params, x)

    assert out.shape == (B, FC2_OUT), out.shape
    assert jnp.allclose(out, ref, atol=1e-4, rtol=1e-4), float(jnp.max(jnp.abs(out - ref)))
    print("KERNEL_OK")
</pallas_src>

<mosaic_0001>
module attributes {stable_mosaic.version = 11 : i64} {
  func.func @_fused_kernel(%arg0: i32, %arg1: memref<8x40xf32, #tpu.memory_space<vmem>>, %arg2: memref<40x1280xf32, #tpu.memory_space<vmem>>, %arg3: memref<1x1280xf32, #tpu.memory_space<vmem>>, %arg4: memref<1280x64xf32, #tpu.memory_space<vmem>>, %arg5: memref<1x64xf32, #tpu.memory_space<vmem>>, %arg6: memref<64x2xf32, #tpu.memory_space<vmem>>, %arg7: memref<1x2xf32, #tpu.memory_space<vmem>>, %arg8: memref<8x2xf32, #tpu.memory_space<vmem>>) attributes {dimension_semantics = [#tpu.dimension_semantics<parallel>], iteration_bounds = array<i64: 2>, scalar_prefetch = 0 : i64, scratch_operands = 0 : i64, tpu.core_type = #tpu.core_type<tc>, window_params = [{transform_indices = @transform_0, window_bounds = array<i64: 8, 40>}, {pipeline_mode = #tpu.pipeline_mode<synchronous>, transform_indices = @transform_1, window_bounds = array<i64: 40, 1280>}, {pipeline_mode = #tpu.pipeline_mode<synchronous>, transform_indices = @transform_2, window_bounds = array<i64: 1, 1280>}, {pipeline_mode = #tpu.pipeline_mode<synchronous>, transform_indices = @transform_3, window_bounds = array<i64: 1280, 64>}, {pipeline_mode = #tpu.pipeline_mode<synchronous>, transform_indices = @transform_4, window_bounds = array<i64: 1, 64>}, {pipeline_mode = #tpu.pipeline_mode<synchronous>, transform_indices = @transform_5, window_bounds = array<i64: 64, 2>}, {pipeline_mode = #tpu.pipeline_mode<synchronous>, transform_indices = @transform_6, window_bounds = array<i64: 1, 2>}, {transform_indices = @transform_7, window_bounds = array<i64: 8, 2>}]} {
    %c0 = arith.constant 0 : index
    %c0_0 = arith.constant 0 : index
    %0 = vector.load %arg1[%c0, %c0_0] : memref<8x40xf32, #tpu.memory_space<vmem>>, vector<8x40xf32>
    %c0_1 = arith.constant 0 : index
    %c0_2 = arith.constant 0 : index
    %1 = vector.load %arg2[%c0_1, %c0_2] : memref<40x1280xf32, #tpu.memory_space<vmem>>, vector<40x1280xf32>
    %cst = arith.constant dense<0.000000e+00> : vector<8x1280xf32>
    %2 = tpu.matmul %0, %1, %cst {dimension_numbers = #tpu.dot_dimension_numbers<[1], [0], [0], [1], [0, 0, 1, 1], [], []>} : vector<8x40xf32>, vector<40x1280xf32>, vector<8x1280xf32> -> vector<8x1280xf32>
    %c0_3 = arith.constant 0 : index
    %c0_4 = arith.constant 0 : index
    %3 = vector.load %arg3[%c0_3, %c0_4] : memref<1x1280xf32, #tpu.memory_space<vmem>>, vector<1x1280xf32>
    %4 = vector.broadcast %3 : vector<1x1280xf32> to vector<8x1280xf32>
    %5 = arith.addf %2, %4 : vector<8x1280xf32>
    %cst_5 = arith.constant 0.000000e+00 : f32
    %6 = vector.broadcast %cst_5 : f32 to vector<8x1280xf32>
    %7 = arith.maximumf %5, %6 : vector<8x1280xf32>
    %c0_6 = arith.constant 0 : index
    %c0_7 = arith.constant 0 : index
    %8 = vector.load %arg4[%c0_6, %c0_7] : memref<1280x64xf32, #tpu.memory_space<vmem>>, vector<1280x64xf32>
    %cst_8 = arith.constant dense<0.000000e+00> : vector<8x64xf32>
    %9 = tpu.matmul %7, %8, %cst_8 {dimension_numbers = #tpu.dot_dimension_numbers<[1], [0], [0], [1], [0, 0, 1, 1], [], []>} : vector<8x1280xf32>, vector<1280x64xf32>, vector<8x64xf32> -> vector<8x64xf32>
    %c0_9 = arith.constant 0 : index
    %c0_10 = arith.constant 0 : index
    %10 = vector.load %arg5[%c0_9, %c0_10] : memref<1x64xf32, #tpu.memory_space<vmem>>, vector<1x64xf32>
    %11 = vector.broadcast %10 : vector<1x64xf32> to vector<8x64xf32>
    %12 = arith.addf %9, %11 : vector<8x64xf32>
    %cst_11 = arith.constant 0.000000e+00 : f32
    %13 = vector.broadcast %cst_11 : f32 to vector<8x64xf32>
    %14 = arith.maximumf %12, %13 : vector<8x64xf32>
    %c0_12 = arith.constant 0 : index
    %c0_13 = arith.constant 0 : index
    %15 = vector.load %arg6[%c0_12, %c0_13] : memref<64x2xf32, #tpu.memory_space<vmem>>, vector<64x2xf32>
    %cst_14 = arith.constant dense<0.000000e+00> : vector<8x2xf32>
    %16 = tpu.matmul %14, %15, %cst_14 {dimension_numbers = #tpu.dot_dimension_numbers<[1], [0], [0], [1], [0, 0, 1, 1], [], []>} : vector<8x64xf32>, vector<64x2xf32>, vector<8x2xf32> -> vector<8x2xf32>
    %c0_15 = arith.constant 0 : index
    %c0_16 = arith.constant 0 : index
    %17 = vector.load %arg7[%c0_15, %c0_16] : memref<1x2xf32, #tpu.memory_space<vmem>>, vector<1x2xf32>
    %18 = vector.broadcast %17 : vector<1x2xf32> to vector<8x2xf32>
    %19 = arith.addf %16, %18 : vector<8x2xf32>
    %c0_17 = arith.constant 0 : index
    %c0_18 = arith.constant 0 : index
    %20 = vector.load %arg8[%c0_17, %c0_18] : memref<8x2xf32, #tpu.memory_space<vmem>>, vector<8x2xf32>
    tpu.vector_store %arg8[%c0_17, %c0_18], %19 {strides = array<i32>} : memref<8x2xf32, #tpu.memory_space<vmem>>, vector<8x2xf32>,
    return
  }
  func.func @transform_0(%arg0: i32) -> (i32, i32) {
    %c0_i32 = arith.constant 0 : i32
    %c0_i32_0 = arith.constant 0 : i32
    return %arg0, %c0_i32 : i32, i32
  }
  func.func @transform_1(%arg0: i32) -> (i32, i32) {
    %c0_i32 = arith.constant 0 : i32
    %c0_i32_0 = arith.constant 0 : i32
    %c0_i32_1 = arith.constant 0 : i32
    return %c0_i32, %c0_i32_0 : i32, i32
  }
  func.func @transform_2(%arg0: i32) -> (i32, i32) {
    %c0_i32 = arith.constant 0 : i32
    %c0_i32_0 = arith.constant 0 : i32
    %c0_i32_1 = arith.constant 0 : i32
    return %c0_i32, %c0_i32_0 : i32, i32
  }
  func.func @transform_3(%arg0: i32) -> (i32, i32) {
    %c0_i32 = arith.constant 0 : i32
    %c0_i32_0 = arith.constant 0 : i32
    %c0_i32_1 = arith.constant 0 : i32
    return %c0_i32, %c0_i32_0 : i32, i32
  }
  func.func @transform_4(%arg0: i32) -> (i32, i32) {
    %c0_i32 = arith.constant 0 : i32
    %c0_i32_0 = arith.constant 0 : i32
    %c0_i32_1 = arith.constant 0 : i32
    return %c0_i32, %c0_i32_0 : i32, i32
  }
  func.func @transform_5(%arg0: i32) -> (i32, i32) {
    %c0_i32 = arith.constant 0 : i32
    %c0_i32_0 = arith.constant 0 : i32
    %c0_i32_1 = arith.constant 0 : i32
    return %c0_i32, %c0_i32_0 : i32, i32
  }
  func.func @transform_6(%arg0: i32) -> (i32, i32) {
    %c0_i32 = arith.constant 0 : i32
    %c0_i32_0 = arith.constant 0 : i32
    %c0_i32_1 = arith.constant 0 : i32
    return %c0_i32, %c0_i32_0 : i32, i32
  }
  func.func @transform_7(%arg0: i32) -> (i32, i32) {
    %c0_i32 = arith.constant 0 : i32
    %c0_i32_0 = arith.constant 0 : i32
    return %arg0, %c0_i32 : i32, i32
  }
}

</mosaic_0001>

<llo_original>
// kernel: cnn2d_forward.1
$region0: #{cnn2d_forward.1}
  #allocation0 [shape = 'u32[]', space=smem, size = 0x4, offset = 0x4, fixed_abs, tag = 'smem constant byte address 0x4 - core index']
  #allocation1 [shape = 'u32[144,128]{1,0:T(1,128)}', space=vmem, size = 0x12000, scoped, tag = 'internal scratch']
  %s0 = inlined_call_operand.vmem [shape: f32[16,40], index: 0, kind: input, shape index: {}]
  %s1 = inlined_call_operand.vmem [shape: f32[40,1280], index: 1, kind: input, shape index: {}]
  %s2 = inlined_call_operand.vmem [shape: f32[1,1280], index: 2, kind: input, shape index: {}]
  %s3 = inlined_call_operand.vmem [shape: f32[1280,64], index: 3, kind: input, shape index: {}]
  %s4 = inlined_call_operand.vmem [shape: f32[1,64], index: 4, kind: input, shape index: {}]
  %s5 = inlined_call_operand.vmem [shape: f32[64,2], index: 5, kind: input, shape index: {}]
  %s6 = inlined_call_operand.vmem [shape: f32[1,2], index: 6, kind: input, shape index: {}]
  %s7 = inlined_call_operand.vmem [shape: f32[16,2], index: 7, kind: output, shape index: {}]
  %s8 = sld [smem:[#allocation0]]
  $region61: #{cnn2d_forward.1} parent=0
    _
  %s10 = ssub.s32 1, %s8
  %s11 = scalar_select 0, %s10, %s8
  loop: start=0, step=1, limit=4
  $region2: #{cnn2d_forward.1} parent=0 // loop_pre_header
    _
  $region3: #{cnn2d_forward.1} parent=0 // loop_header
    %s13 = sphi 0, %s17
    %p14 = scmp.ge.s32.totalorder %s13, 4
    %s23 = sphi 0, %s25
    %s26 = sphi 0, %s23
    %s27 = sphi 0, %s26
    %s43 = sphi 0, %s27
    %s47 = sphi 0, %s47
    %s49 = sphi 0, %s47
    %s50 = sphi 0, %s49
    %s64 = sphi 0, %s50
    %s68 = sphi 0, %s68
    %s70 = sphi 0, %s68
    %s71 = sphi 0, %s70
    %s85 = sphi 0, %s71
    %s89 = sphi 0, %s89
    %s91 = sphi 0, %s89
    %s92 = sphi 0, %s91
    %s106 = sphi 0, %s92
    %s110 = sphi 0, %s110
    %s112 = sphi 0, %s110
    %s113 = sphi 0, %s112
    %s127 = sphi 0, %s113
    %s131 = sphi 0, %s131
    %s133 = sphi 0, %s131
    %s134 = sphi 0, %s133
    %s148 = sphi 0, %s134
    %s152 = sphi 0, %s152
    %s154 = sphi 0, %s152
    %s155 = sphi 0, %s154
    %s169 = sphi 0, %s155
    %s175 = sphi 0, %s177
    %s178 = sphi 0, %s175
    %s179 = sphi 0, %s178
    %s195 = sphi 0, %s179
  $region4: #{cnn2d_forward.1} parent=0 // loop_header_branch
    %16 = sbr.rel (%p14) target = $region8
  $region5: #{cnn2d_forward.1} parent=0 // loop_body
    %s18 = ssub.s32 %s13, 1
    %s19 = ssub.s32 %s13, 2
    %s20 = sadd.s32 %s13, 1
    %s21 = ssub.s32 %s13, %s20
    %p22 = scmp.eq.s32.totalorder %s21, 0
    %s24 = sadd.s32 %s23, 1
    %s25 = scalar_select %p22, %s23, %s24
    %p28 = pneg %p22
    %p29 = scmp.eq.s32.totalorder %s13, 1
    %p30 = por %p28, %p29
    %p31 = scmp.ne.s32.totalorder %s23, %s26
    %p32 = scmp.eq.s32.totalorder %s13, 0
    %p33 = por %p31, %p32
    %p34 = scmp.ne.s32.totalorder %s23, %s26
    %p35 = scmp.eq.s32.totalorder %s18, 1
    %p36 = por %p34, %p35
    %p37 = scmp.ne.s32.totalorder %s26, %s27
    %p38 = scmp.eq.s32.totalorder %s18, 0
    %p39 = por %p37, %p38
    %p40 = scmp.ne.s32.totalorder %s26, %s27
    %p41 = scmp.eq.s32.totalorder %s19, 1
    %p42 = por %p40, %p41
    %p44 = scmp.ne.s32.totalorder %s27, %s43
    %p45 = scmp.eq.s32.totalorder %s19, 0
    %p46 = por %p44, %p45
    %s48 = sadd.s32 %s47, 1
    %p51 = scmp.eq.s32.totalorder %s13, 1
    %p52 = scmp.ne.s32.totalorder %s47, %s49
    %p53 = scmp.eq.s32.totalorder %s13, 0
    %p54 = por %p52, %p53
    %p55 = scmp.ne.s32.totalorder %s47, %s49
    %p56 = scmp.eq.s32.totalorder %s18, 1
    %p57 = por %p55, %p56
    %p58 = scmp.ne.s32.totalorder %s49, %s50
    %p59 = scmp.eq.s32.totalorder %s18, 0
    %p60 = por %p58, %p59
    %p61 = scmp.ne.s32.totalorder %s49, %s50
    %p62 = scmp.eq.s32.totalorder %s19, 1
    %p63 = por %p61, %p62
    %p65 = scmp.ne.s32.totalorder %s50, %s64
    %p66 = scmp.eq.s32.totalorder %s19, 0
    %p67 = por %p65, %p66
    %s69 = sadd.s32 %s68, 1
    %p72 = scmp.eq.s32.totalorder %s13, 1
    %p73 = scmp.ne.s32.totalorder %s68, %s70
    %p74 = scmp.eq.s32.totalorder %s13, 0
    %p75 = por %p73, %p74
    %p76 = scmp.ne.s32.totalorder %s68, %s70
    %p77 = scmp.eq.s32.totalorder %s18, 1
    %p78 = por %p76, %p77
    %p79 = scmp.ne.s32.totalorder %s70, %s71
    %p80 = scmp.eq.s32.totalorder %s18, 0
    %p81 = por %p79, %p80
    %p82 = scmp.ne.s32.totalorder %s70, %s71
    %p83 = scmp.eq.s32.totalorder %s19, 1
    %p84 = por %p82, %p83
    %p86 = scmp.ne.s32.totalorder %s71, %s85
    %p87 = scmp.eq.s32.totalorder %s19, 0
    %p88 = por %p86, %p87
    %s90 = sadd.s32 %s89, 1
    %p93 = scmp.eq.s32.totalorder %s13, 1
    %p94 = scmp.ne.s32.totalorder %s89, %s91
    %p95 = scmp.eq.s32.totalorder %s13, 0
    %p96 = por %p94, %p95
    %p97 = scmp.ne.s32.totalorder %s89, %s91
    %p98 = scmp.eq.s32.totalorder %s18, 1
    %p99 = por %p97, %p98
    %p100 = scmp.ne.s32.totalorder %s91, %s92
    %p101 = scmp.eq.s32.totalorder %s18, 0
    %p102 = por %p100, %p101
    %p103 = scmp.ne.s32.totalorder %s91, %s92
    %p104 = scmp.eq.s32.totalorder %s19, 1
    %p105 = por %p103, %p104
    %p107 = scmp.ne.s32.totalorder %s92, %s106
    %p108 = scmp.eq.s32.totalorder %s19, 0
    %p109 = por %p107, %p108
    %s111 = sadd.s32 %s110, 1
    %p114 = scmp.eq.s32.totalorder %s13, 1
    %p115 = scmp.ne.s32.totalorder %s110, %s112
    %p116 = scmp.eq.s32.totalorder %s13, 0
    %p117 = por %p115, %p116
    %p118 = scmp.ne.s32.totalorder %s110, %s112
    %p119 = scmp.eq.s32.totalorder %s18, 1
    %p120 = por %p118, %p119
    %p121 = scmp.ne.s32.totalorder %s112, %s113
    %p122 = scmp.eq.s32.totalorder %s18, 0
    %p123 = por %p121, %p122
    %p124 = scmp.ne.s32.totalorder %s112, %s113
    %p125 = scmp.eq.s32.totalorder %s19, 1
    %p126 = por %p124, %p125
    %p128 = scmp.ne.s32.totalorder %s113, %s127
    %p129 = scmp.eq.s32.totalorder %s19, 0
    %p130 = por %p128, %p129
    %s132 = sadd.s32 %s131, 1
    %p135 = scmp.eq.s32.totalorder %s13, 1
    %p136 = scmp.ne.s32.totalorder %s131, %s133
    %p137 = scmp.eq.s32.totalorder %s13, 0
    %p138 = por %p136, %p137
    %p139 = scmp.ne.s32.totalorder %s131, %s133
    %p140 = scmp.eq.s32.totalorder %s18, 1
    %p141 = por %p139, %p140
    %p142 = scmp.ne.s32.totalorder %s133, %s134
    %p143 = scmp.eq.s32.totalorder %s18, 0
    %p144 = por %p142, %p143
    %p145 = scmp.ne.s32.totalorder %s133, %s134
    %p146 = scmp.eq.s32.totalorder %s19, 1
    %p147 = por %p145, %p146
    %p149 = scmp.ne.s32.totalorder %s134, %s148
    %p150 = scmp.eq.s32.totalorder %s19, 0
    %p151 = por %p149, %p150
    %s153 = sadd.s32 %s152, 1
    %p156 = scmp.eq.s32.totalorder %s13, 1
    %p157 = scmp.ne.s32.totalorder %s152, %s154
    %p158 = scmp.eq.s32.totalorder %s13, 0
    %p159 = por %p157, %p158
    %p160 = scmp.ne.s32.totalorder %s152, %s154
    %p161 = scmp.eq.s32.totalorder %s18, 1
    %p162 = por %p160, %p161
    %p163 = scmp.ne.s32.totalorder %s154, %s155
    %p164 = scmp.eq.s32.totalorder %s18, 0
    %p165 = por %p163, %p164
    %p166 = scmp.ne.s32.totalorder %s154, %s155
    %p167 = scmp.eq.s32.totalorder %s19, 1
    %p168 = por %p166, %p167
    %p170 = scmp.ne.s32.totalorder %s155, %s169
    %p171 = scmp.eq.s32.totalorder %s19, 0
    %p172 = por %p170, %p171
    %s173 = ssub.s32 %s13, %s20
    %p174 = scmp.eq.s32.totalorder %s173, 0
    %s176 = sadd.s32 %s175, 1
    %s177 = scalar_select %p174, %s175, %s176
    %p180 = pneg %p174
    %p181 = scmp.eq.s32.totalorder %s13, 1
    %p182 = por %p180, %p181
    %p183 = scmp.ne.s32.totalorder %s175, %s178
    %p184 = scmp.eq.s32.totalorder %s13, 0
    %p185 = por %p183, %p184
    %p186 = scmp.ne.s32.totalorder %s175, %s178
    %p187 = scmp.eq.s32.totalorder %s18, 1
    %p188 = por %p186, %p187
    %p189 = scmp.ne.s32.totalorder %s178, %s179
    %p190 = scmp.eq.s32.totalorder %s18, 0
    %p191 = por %p189, %p190
    %p192 = scmp.ne.s32.totalorder %s178, %s179
    %p193 = scmp.eq.s32.totalorder %s19, 1
    %p194 = por %p192, %p193
    %p196 = scmp.ne.s32.totalorder %s179, %s195
    %p197 = scmp.eq.s32.totalorder %s19, 0
    %p198 = por %p196, %p197
    %p199 = scmp.le.s32.totalorder 1, %s13
    %p200 = scmp.lt.s32.totalorder %s13, 3
    %p201 = pnand %p199, %p200
    %p202 = pneg %p201
    // Predicated region
    $region9: #{cnn2d_forward.1} parent=5 // pred_check
      _
    $region10: #{cnn2d_forward.1} parent=5 // pred_check_branch
      %204 = sbr.rel (%p201) target = $region12
    $region11: #{cnn2d_forward.1} parent=5 // pred_region
      %s205 = ssub.s32 %s13, 1
      // Predicated region
      $region13: #{cnn2d_forward.1} parent=11 // pred_check
        %p206 = pneg %p60
      $region14: #{cnn2d_forward.1} parent=11 // pred_check_branch
        %208 = sbr.rel (%p206) target = $region16
      $region15: #{cnn2d_forward.1} parent=11 // pred_region
        _
      $region16: #{cnn2d_forward.1} parent=11 // pred_fallthru
        _
      // Predicated region
      $region17: #{cnn2d_forward.1} parent=11 // pred_check
        %p209 = pneg %p81
      $region18: #{cnn2d_forward.1} parent=11 // pred_check_branch
        %211 = sbr.rel (%p209) target = $region20
      $region19: #{cnn2d_forward.1} parent=11 // pred_region
        _
      $region20: #{cnn2d_forward.1} parent=11 // pred_fallthru
        _
      // Predicated region
      $region21: #{cnn2d_forward.1} parent=11 // pred_check
        %p212 = pneg %p102
      $region22: #{cnn2d_forward.1} parent=11 // pred_check_branch
        %214 = sbr.rel (%p212) target = $region24
      $region23: #{cnn2d_forward.1} parent=11 // pred_region
        _
      $region24: #{cnn2d_forward.1} parent=11 // pred_fallthru
        _
      // Predicated region
      $region25: #{cnn2d_forward.1} parent=11 // pred_check
        %p215 = pneg %p123
      $region26: #{cnn2d_forward.1} parent=11 // pred_check_branch
        %217 = sbr.rel (%p215) target = $region28
      $region27: #{cnn2d_forward.1} parent=11 // pred_region
        _
      $region28: #{cnn2d_forward.1} parent=11 // pred_fallthru
        _
      // Predicated region
      $region29: #{cnn2d_forward.1} parent=11 // pred_check
        %p218 = pneg %p144
      $region30: #{cnn2d_forward.1} parent=11 // pred_check_branch
        %220 = sbr.rel (%p218) target = $region32
      $region31: #{cnn2d_forward.1} parent=11 // pred_region
        _
      $region32: #{cnn2d_forward.1} parent=11 // pred_fallthru
        _
      // Predicated region
      $region33: #{cnn2d_forward.1} parent=11 // pred_check
        %p221 = pneg %p165
      $region34: #{cnn2d_forward.1} parent=11 // pred_check_branch
        %223 = sbr.rel (%p221) target = $region36
      $region35: #{cnn2d_forward.1} parent=11 // pred_region
        _
      $region36: #{cnn2d_forward.1} parent=11 // pred_fallthru
        _
    $region12: #{cnn2d_forward.1} parent=5 // pred_fallthru
      _
    %p224 = scmp.lt.s32.totalorder %s13, 2
    // Predicated region
    $region37: #{cnn2d_forward.1} parent=5 // pred_check
      %p225 = pneg %p224
    $region38: #{cnn2d_forward.1} parent=5 // pred_check_branch
      %227 = sbr.rel (%p225) target = $region40
    $region39: #{cnn2d_forward.1} parent=5 // pred_region
      // Predicated region
      $region41: #{cnn2d_forward.1} parent=39 // pred_check
        %p228 = pneg %p33
      $region42: #{cnn2d_forward.1} parent=39 // pred_check_branch
        %230 = sbr.rel (%p228) target = $region44
      $region43: #{cnn2d_forward.1} parent=39 // pred_region
        %p231 = scmp.lt.s32.totalorder %s13, 1
        %s232 = scalar_select %p231, %s13, 1
        %s233 = smul.addr %s232, 8
        %s234 = scalar_lea.vmem %s0, %s233
      $region44: #{cnn2d_forward.1} parent=39 // pred_fallthru
        _
    $region40: #{cnn2d_forward.1} parent=5 // pred_fallthru
      _
    %p235 = scmp.le.s32.totalorder 1, %s13
    %p236 = scmp.lt.s32.totalorder %s13, 3
    %p237 = pnand %p235, %p236
    %p238 = pneg %p237
    // Predicated region
    $region45: #{cnn2d_forward.1} parent=5 // pred_check
      _
    $region46: #{cnn2d_forward.1} parent=5 // pred_check_branch
      %240 = sbr.rel (%p237) target = $region48
    $region47: #{cnn2d_forward.1} parent=5 // pred_region
      %s241 = ssub.s32 %s13, 1
      %p242 = scmp.lt.s32.totalorder %s18, 1
      %s243 = scalar_select %p242, %s18, 1
      %s244 = smul.addr %s243, 8
      %s245 = scalar_lea.vmem %s0, %s244
      %p246 = pneg %p39
      %p247 = pneg %p36
      %p248 = pneg %p60
      %p249 = pneg %p57
      %p250 = pneg %p81
      %p251 = pneg %p78
      %p252 = pneg %p102
      %p253 = pneg %p99
      %p254 = pneg %p123
      %p255 = pneg %p120
      %p256 = pneg %p144
      %p257 = pneg %p141
      %p258 = pneg %p165
      %p259 = pneg %p162
      %p260 = pneg %p191
      %p261 = pneg %p188
      %p262 = scmp.lt.s32.totalorder %s18, 1
      %s263 = scalar_select %p262, %s18, 1
      %s264 = smul.addr %s263, 8
      %s265 = scalar_lea.vmem %s7, %s264
      %p266 = scmp.lt.s32.totalorder %s18, 1
      %s267 = scalar_select %p266, %s18, 1
      %s268 = smul.addr %s267, 8
      %s269 = scalar_lea.vmem %s0, %s268
      %p270 = scmp.lt.s32.totalorder %s18, 1
      %s271 = scalar_select %p270, %s18, 1
      %s272 = smul.addr %s271, 8
      %s273 = scalar_lea.vmem %s7, %s272
      %v274 = vld [vmem:[%s269] sm:$0xff]
      %v275 = vld [vmem:[%s1] sm:$0xff]
      %v276 = vld [vmem:[%s1 + $0x8] sm:$0xff]
      %v277 = vld [vmem:[%s1 + $0x10] sm:$0xff]
      %v278 = vld [vmem:[%s1 + $0x18] sm:$0xff]
      %v279 = vld [vmem:[%s1 + $0x20] sm:$0xff]
      %v280 = vld [vmem:[%s1 + $0x28] sm:$0xff]
      %v281 = vld [vmem:[%s1 + $0x30] sm:$0xff]
      %v282 = vld [vmem:[%s1 + $0x38] sm:$0xff]
      %v283 = vld [vmem:[%s1 + $0x40] sm:$0xff]
      %v284 = vld [vmem:[%s1 + $0x48] sm:$0xff]
      %v285 = vld [vmem:[%s1 + $0x50] sm:$0xff]
      %v286 = vld [vmem:[%s1 + $0x58] sm:$0xff]
      %v287 = vld [vmem:[%s1 + $0x60] sm:$0xff]
      %v288 = vld [vmem:[%s1 + $0x68] sm:$0xff]
      %v289 = vld [vmem:[%s1 + $0x70] sm:$0xff]
      %v290 = vld [vmem:[%s1 + $0x78] sm:$0xff]
      %v291 = vld [vmem:[%s1 + $0x80] sm:$0xff]
      %v292 = vld [vmem:[%s1 + $0x88] sm:$0xff]
      %v293 = vld [vmem:[%s1 + $0x90] sm:$0xff]
      %v294 = vld [vmem:[%s1 + $0x98] sm:$0xff]
      %v295 = vld [vmem:[%s1 + $0xa0] sm:$0xff]
      %v296 = vld [vmem:[%s1 + $0xa8] sm:$0xff]
      %v297 = vld [vmem:[%s1 + $0xb0] sm:$0xff]
      %v298 = vld [vmem:[%s1 + $0xb8] sm:$0xff]
      %v299 = vld [vmem:[%s1 + $0xc0] sm:$0xff]
      %v300 = vld [vmem:[%s1 + $0xc8] sm:$0xff]
      %v301 = vld [vmem:[%s1 + $0xd0] sm:$0xff]
      %v302 = vld [vmem:[%s1 + $0xd8] sm:$0xff]
      %v303 = vld [vmem:[%s1 + $0xe0] sm:$0xff]
      %v304 = vld [vmem:[%s1 + $0xe8] sm:$0xff]
      %v305 = vld [vmem:[%s1 + $0xf0] sm:$0xff]
      %v306 = vld [vmem:[%s1 + $0xf8] sm:$0xff]
      %v307 = vld [vmem:[%s1 + $0x100] sm:$0xff]
      %v308 = vld [vmem:[%s1 + $0x108] sm:$0xff]
      %v309 = vld [vmem:[%s1 + $0x110] sm:$0xff]
      %v310 = vld [vmem:[%s1 + $0x118] sm:$0xff]
      %v311 = vld [vmem:[%s1 + $0x120] sm:$0xff]
      %v312 = vld [vmem:[%s1 + $0x128] sm:$0xff]
      %v313 = vld [vmem:[%s1 + $0x130] sm:$0xff]
      %v314 = vld [vmem:[%s1 + $0x138] sm:$0xff]
      %v315 = vld [vmem:[%s1 + $0x140] sm:$0xff]
      %v316 = vld [vmem:[%s1 + $0x148] sm:$0xff]
      %v317 = vld [vmem:[%s1 + $0x150] sm:$0xff]
      %v318 = vld [vmem:[%s1 + $0x158] sm:$0xff]
      %v319 = vld [vmem:[%s1 + $0x160] sm:$0xff]
      %v320 = vld [vmem:[%s1 + $0x168] sm:$0xff]
      %v321 = vld [vmem:[%s1 + $0x170] sm:$0xff]
      %v322 = vld [vmem:[%s1 + $0x178] sm:$0xff]
      %v323 = vld [vmem:[%s1 + $0x180] sm:$0xff]
      %v324 = vld [vmem:[%s1 + $0x188] sm:$0xff]
      %v325 = vld [vmem:[%s2] sm:$0xff]
      %v326 = vld [vmem:[%s2 + $0x8] sm:$0x3]
      %v329 = vlaneseq
      %v330 = vshrl.u32 %v329, 7
      %v331 = vsub.s32 0, %v330
      %v332 = vrot.slane %v325, %v331
      %v333 = vlaneseq
      %v334 = vshrl.u32 %v333, 7
      %v335 = vsub.s32 1, %v334
      %v336 = vrot.slane %v325, %v335
      %v337 = vlaneseq
      %v338 = vshrl.u32 %v337, 7
      %v339 = vsub.s32 2, %v338
      %v340 = vrot.slane %v325, %v339
      %v341 = vlaneseq
      %v342 = vshrl.u32 %v341, 7
      %v343 = vsub.s32 3, %v342
      %v344 = vrot.slane %v325, %v343
      %v345 = vlaneseq
      %v346 = vshrl.u32 %v345, 7
      %v347 = vsub.s32 4, %v346
      %v348 = vrot.slane %v325, %v347
      %v349 = vlaneseq
      %v350 = vshrl.u32 %v349, 7
      %v351 = vsub.s32 5, %v350
      %v352 = vrot.slane %v325, %v351
      %v353 = vlaneseq
      %v354 = vshrl.u32 %v353, 7
      %v355 = vsub.s32 6, %v354
      %v356 = vrot.slane %v325, %v355
      %v357 = vlaneseq
      %v358 = vshrl.u32 %v357, 7
      %v359 = vsub.s32 7, %v358
      %v360 = vrot.slane %v325, %v359
      %v361 = vlaneseq
      %v362 = vshrl.u32 %v361, 7
      %v363 = vsub.s32 0, %v362
      %v364 = vrot.slane %v326, %v363
      %v365 = vlaneseq
      %v366 = vshrl.u32 %v365, 7
      %v367 = vsub.s32 1, %v366
      %v368 = vrot.slane %v326, %v367
      %vm379 = vcmask 326656
      %v381 = vsel %vm379, %v274, 0
      %383 = vmatprep.subr.mxu0 0.0
      %384 = vmatpush1.msra.mxu0 0.0
      %385 = vmatprep.subr.mxu0 0.0
      %386 = vmatpush1.msra.mxu0 0.0
      %387 = vmatprep.subr.mxu0 0.0
      %388 = vmatpush1.msra.mxu0 0.0
      %389 = vmatprep.subr.mxu0 0.0
      %390 = vmatpush1.msra.mxu0 0.0
      %391 = vmatprep.subr.mxu0 0.0
      %392 = vmatpush1.msra.mxu0 0.0
      %393 = vmatprep.subr.mxu0 0.0
      %394 = vmatpush1.msra.mxu0 0.0
      %395 = vmatprep.subr.mxu0 0.0
      %396 = vmatpush1.msra.mxu0 0.0
      %397 = vmatprep.subr.mxu0 0.0
      %398 = vmatpush1.msra.mxu0 0.0
      %399 = vmatprep.subr.mxu0 0.0
      %400 = vmatpush1.msra.mxu0 0.0
      %401 = vmatprep.subr.mxu0 0.0
      %402 = vmatpush1.msra.mxu0 0.0
      %403 = vmatprep.subr.mxu0 0.0
      %404 = vmatpush1.msra.mxu0 0.0
      %405 = vmatprep.subr.mxu0 %v316
      %406 = vmatpush1.msra.mxu0 %v315
      %407 = vmatprep.subr.mxu0 %v306
      %408 = vmatpush1.msra.mxu0 %v305
      %409 = vmatprep.subr.mxu0 %v296
      %410 = vmatpush1.msra.mxu0 %v295
      %411 = vmatprep.subr.mxu0 %v286
      %412 = vmatpush1.msra.mxu0 %v285
      %413 = vmatprep.subr.mxu0 %v276
      %414 = vmatpush1.msra.mxu0 %v275
      %415 = vmatprep.subr.mxu0 0.0
      %416 = vmatpush2.msra.mxu0 0.0
      %417 = vmatprep.subr.mxu0 0.0
      %418 = vmatpush2.msra.mxu0 0.0
      %419 = vmatprep.subr.mxu0 0.0
      %420 = vmatpush2.msra.mxu0 0.0
      %421 = vmatprep.subr.mxu0 0.0
      %422 = vmatpush2.msra.mxu0 0.0
      %423 = vmatprep.subr.mxu0 0.0
      %424 = vmatpush2.msra.mxu0 0.0
      %425 = vmatprep.subr.mxu0 0.0
      %426 = vmatpush2.msra.mxu0 0.0
      %427 = vmatprep.subr.mxu0 0.0
      %428 = vmatpush2.msra.mxu0 0.0
      %429 = vmatprep.subr.mxu0 0.0
      %430 = vmatpush2.msra.mxu0 0.0
      %431 = vmatprep.subr.mxu0 0.0
      %432 = vmatpush2.msra.mxu0 0.0
      %433 = vmatprep.subr.mxu0 0.0
      %434 = vmatpush2.msra.mxu0 0.0
      %435 = vmatprep.subr.mxu0 0.0
      %436 = vmatpush2.msra.mxu0 0.0
      %437 = vmatprep.subr.mxu0 0.0
      %438 = vmatpush2.msra.mxu0 0.0
      %439 = vmatprep.subr.mxu0 0.0
      %440 = vmatpush2.msra.mxu0 0.0
      %441 = vmatprep.subr.mxu0 0.0
      %442 = vmatpush2.msra.mxu0 0.0
      %443 = vmatprep.subr.mxu0 0.0
      %444 = vmatpush2.msra.mxu0 0.0
      %445 = vmatprep.subr.mxu0 0.0
      %446 = vmatpush2.msra.mxu0 0.0
      %447 = vmatprep.mubr.f32.mxu0 0.0
      %448 = vmatmul.mubr.f32.gmra.mxu0 %v381
      %v449 = vpop.f32.mrf.mxu0
      %v450 = vadd.f32 %v332, %v449
      %v451 = vpop.f32.mrf.mxu0
      %v452 = vadd.f32 %v336, %v451
      %453 = vdwg.mxu0
      %454 = vmatprep.subr.mxu0 0.0
      %455 = vmatpush1.msra.mxu0 0.0
      %456 = vmatprep.subr.mxu0 0.0
      %457 = vmatpush1.msra.mxu0 0.0
      %458 = vmatprep.subr.mxu0 0.0
      %459 = vmatpush1.msra.mxu0 0.0
      %460 = vmatprep.subr.mxu0 0.0
      %461 = vmatpush1.msra.mxu0 0.0
      %462 = vmatprep.subr.mxu0 0.0
      %463 = vmatpush1.msra.mxu0 0.0
      %464 = vmatprep.subr.mxu0 0.0
      %465 = vmatpush1.msra.mxu0 0.0
      %466 = vmatprep.subr.mxu0 0.0
      %467 = vmatpush1.msra.mxu0 0.0
      %468 = vmatprep.subr.mxu0 0.0
      %469 = vmatpush1.msra.mxu0 0.0
      %470 = vmatprep.subr.mxu0 0.0
      %471 = vmatpush1.msra.mxu0 0.0
      %472 = vmatprep.subr.mxu0 0.0
      %473 = vmatpush1.msra.mxu0 0.0
      %474 = vmatprep.subr.mxu0 0.0
      %475 = vmatpush1.msra.mxu0 0.0
      %476 = vmatprep.subr.mxu0 %v318
      %477 = vmatpush1.msra.mxu0 %v317
      %478 = vmatprep.subr.mxu0 %v308
      %479 = vmatpush1.msra.mxu0 %v307
      %480 = vmatprep.subr.mxu0 %v298
      %481 = vmatpush1.msra.mxu0 %v297
      %482 = vmatprep.subr.mxu0 %v288
      %483 = vmatpush1.msra.mxu0 %v287
      %484 = vmatprep.subr.mxu0 %v278
      %485 = vmatpush1.msra.mxu0 %v277
      %486 = vmatprep.subr.mxu0 0.0
      %487 = vmatpush2.msra.mxu0 0.0
      %488 = vmatprep.subr.mxu0 0.0
      %489 = vmatpush2.msra.mxu0 0.0
      %490 = vmatprep.subr.mxu0 0.0
      %491 = vmatpush2.msra.mxu0 0.0
      %492 = vmatprep.subr.mxu0 0.0
      %493 = vmatpush2.msra.mxu0 0.0
      %494 = vmatprep.subr.mxu0 0.0
      %495 = vmatpush2.msra.mxu0 0.0
      %496 = vmatprep.subr.mxu0 0.0
      %497 = vmatpush2.msra.mxu0 0.0
      %498 = vmatprep.subr.mxu0 0.0
      %499 = vmatpush2.msra.mxu0 0.0
      %500 = vmatprep.subr.mxu0 0.0
      %501 = vmatpush2.msra.mxu0 0.0
      %502 = vmatprep.subr.mxu0 0.0
      %503 = vmatpush2.msra.mxu0 0.0
      %504 = vmatprep.subr.mxu0 0.0
      %505 = vmatpush2.msra.mxu0 0.0
      %506 = vmatprep.subr.mxu0 0.0
      %507 = vmatpush2.msra.mxu0 0.0
      %508 = vmatprep.subr.mxu0 0.0
      %509 = vmatpush2.msra.mxu0 0.0
      %510 = vmatprep.subr.mxu0 0.0
      %511 = vmatpush2.msra.mxu0 0.0
      %512 = vmatprep.subr.mxu0 0.0
      %513 = vmatpush2.msra.mxu0 0.0
      %514 = vmatprep.subr.mxu0 0.0
      %515 = vmatpush2.msra.mxu0 0.0
      %516 = vmatprep.subr.mxu0 0.0
      %517 = vmatpush2.msra.mxu0 0.0
      %518 = vmatprep.mubr.f32.mxu0 0.0
      %519 = vmatmul.mubr.f32.gmra.mxu0 %v381
      %v520 = vpop.f32.mrf.mxu0
      %v521 = vadd.f32 %v340, %v520
      %v522 = vpop.f32.mrf.mxu0
      %v523 = vadd.f32 %v344, %v522
      %524 = vdwg.mxu0
      %525 = vmatprep.subr.mxu0 0.0
      %526 = vmatpush1.msra.mxu0 0.0
      %527 = vmatprep.subr.mxu0 0.0
      %528 = vmatpush1.msra.mxu0 0.0
      %529 = vmatprep.subr.mxu0 0.0
      %530 = vmatpush1.msra.mxu0 0.0
      %531 = vmatprep.subr.mxu0 0.0
      %532 = vmatpush1.msra.mxu0 0.0
      %533 = vmatprep.subr.mxu0 0.0
      %534 = vmatpush1.msra.mxu0 0.0
      %535 = vmatprep.subr.mxu0 0.0
      %536 = vmatpush1.msra.mxu0 0.0
      %537 = vmatprep.subr.mxu0 0.0
      %538 = vmatpush1.msra.mxu0 0.0
      %539 = vmatprep.subr.mxu0 0.0
      %540 = vmatpush1.msra.mxu0 0.0
      %541 = vmatprep.subr.mxu0 0.0
      %542 = vmatpush1.msra.mxu0 0.0
      %543 = vmatprep.subr.mxu0 0.0
      %544 = vmatpush1.msra.mxu0 0.0
      %545 = vmatprep.subr.mxu0 0.0
      %546 = vmatpush1.msra.mxu0 0.0
      %547 = vmatprep.subr.mxu0 %v320
      %548 = vmatpush1.msra.mxu0 %v319
      %549 = vmatprep.subr.mxu0 %v310
      %550 = vmatpush1.msra.mxu0 %v309
      %551 = vmatprep.subr.mxu0 %v300
      %552 = vmatpush1.msra.mxu0 %v299
      %553 = vmatprep.subr.mxu0 %v290
      %554 = vmatpush1.msra.mxu0 %v289
      %555 = vmatprep.subr.mxu0 %v280
      %556 = vmatpush1.msra.mxu0 %v279
      %557 = vmatprep.subr.mxu0 0.0
      %558 = vmatpush2.msra.mxu0 0.0
      %559 = vmatprep.subr.mxu0 0.0
      %560 = vmatpush2.msra.mxu0 0.0
      %561 = vmatprep.subr.mxu0 0.0
      %562 = vmatpush2.msra.mxu0 0.0
      %563 = vmatprep.subr.mxu0 0.0
      %564 = vmatpush2.msra.mxu0 0.0
      %565 = vmatprep.subr.mxu0 0.0
      %566 = vmatpush2.msra.mxu0 0.0
      %567 = vmatprep.subr.mxu0 0.0
      %568 = vmatpush2.msra.mxu0 0.0
      %569 = vmatprep.subr.mxu0 0.0
      %570 = vmatpush2.msra.mxu0 0.0
      %571 = vmatprep.subr.mxu0 0.0
      %572 = vmatpush2.msra.mxu0 0.0
      %573 = vmatprep.subr.mxu0 0.0
      %574 = vmatpush2.msra.mxu0 0.0
      %575 = vmatprep.subr.mxu0 0.0
      %576 = vmatpush2.msra.mxu0 0.0
      %577 = vmatprep.subr.mxu0 0.0
      %578 = vmatpush2.msra.mxu0 0.0
      %579 = vmatprep.subr.mxu0 0.0
      %580 = vmatpush2.msra.mxu0 0.0
      %581 = vmatprep.subr.mxu0 0.0
      %582 = vmatpush2.msra.mxu0 0.0
      %583 = vmatprep.subr.mxu0 0.0
      %584 = vmatpush2.msra.mxu0 0.0
      %585 = vmatprep.subr.mxu0 0.0
      %586 = vmatpush2.msra.mxu0 0.0
      %587 = vmatprep.subr.mxu0 0.0
      %588 = vmatpush2.msra.mxu0 0.0
      %589 = vmatprep.mubr.f32.mxu0 0.0
      %590 = vmatmul.mubr.f32.gmra.mxu0 %v381
      %v591 = vpop.f32.mrf.mxu0
      %v592 = vadd.f32 %v348, %v591
      %v593 = vpop.f32.mrf.mxu0
      %v594 = vadd.f32 %v352, %v593
      %595 = vdwg.mxu0
      %596 = vmatprep.subr.mxu0 0.0
      %597 = vmatpush1.msra.mxu0 0.0
      %598 = vmatprep.subr.mxu0 0.0
      %599 = vmatpush1.msra.mxu0 0.0
      %600 = vmatprep.subr.mxu0 0.0
      %601 = vmatpush1.msra.mxu0 0.0
      %602 = vmatprep.subr.mxu0 0.0
      %603 = vmatpush1.msra.mxu0 0.0
      %604 = vmatprep.subr.mxu0 0.0
      %605 = vmatpush1.msra.mxu0 0.0
      %606 = vmatprep.subr.mxu0 0.0
      %607 = vmatpush1.msra.mxu0 0.0
      %608 = vmatprep.subr.mxu0 0.0
      %609 = vmatpush1.msra.mxu0 0.0
      %610 = vmatprep.subr.mxu0 0.0
      %611 = vmatpush1.msra.mxu0 0.0
      %612 = vmatprep.subr.mxu0 0.0
      %613 = vmatpush1.msra.mxu0 0.0
      %614 = vmatprep.subr.mxu0 0.0
      %615 = vmatpush1.msra.mxu0 0.0
      %616 = vmatprep.subr.mxu0 0.0
      %617 = vmatpush1.msra.mxu0 0.0
      %618 = vmatprep.subr.mxu0 %v322
      %619 = vmatpush1.msra.mxu0 %v321
      %620 = vmatprep.subr.mxu0 %v312
      %621 = vmatpush1.msra.mxu0 %v311
      %622 = vmatprep.subr.mxu0 %v302
      %623 = vmatpush1.msra.mxu0 %v301
      %624 = vmatprep.subr.mxu0 %v292
      %625 = vmatpush1.msra.mxu0 %v291
      %626 = vmatprep.subr.mxu0 %v282
      %627 = vmatpush1.msra.mxu0 %v281
      %628 = vmatprep.subr.mxu0 0.0
      %629 = vmatpush2.msra.mxu0 0.0
      %630 = vmatprep.subr.mxu0 0.0
      %631 = vmatpush2.msra.mxu0 0.0
      %632 = vmatprep.subr.mxu0 0.0
      %633 = vmatpush2.msra.mxu0 0.0
      %634 = vmatprep.subr.mxu0 0.0
      %635 = vmatpush2.msra.mxu0 0.0
      %636 = vmatprep.subr.mxu0 0.0
      %637 = vmatpush2.msra.mxu0 0.0
      %638 = vmatprep.subr.mxu0 0.0
      %639 = vmatpush2.msra.mxu0 0.0
      %640 = vmatprep.subr.mxu0 0.0
      %641 = vmatpush2.msra.mxu0 0.0
      %642 = vmatprep.subr.mxu0 0.0
      %643 = vmatpush2.msra.mxu0 0.0
      %644 = vmatprep.subr.mxu0 0.0
      %645 = vmatpush2.msra.mxu0 0.0
      %646 = vmatprep.subr.mxu0 0.0
      %647 = vmatpush2.msra.mxu0 0.0
      %648 = vmatprep.subr.mxu0 0.0
      %649 = vmatpush2.msra.mxu0 0.0
      %650 = vmatprep.subr.mxu0 0.0
      %651 = vmatpush2.msra.mxu0 0.0
      %652 = vmatprep.subr.mxu0 0.0
      %653 = vmatpush2.msra.mxu0 0.0
      %654 = vmatprep.subr.mxu0 0.0
      %655 = vmatpush2.msra.mxu0 0.0
      %656 = vmatprep.subr.mxu0 0.0
      %657 = vmatpush2.msra.mxu0 0.0
      %658 = vmatprep.subr.mxu0 0.0
      %659 = vmatpush2.msra.mxu0 0.0
      %660 = vmatprep.mubr.f32.mxu0 0.0
      %661 = vmatmul.mubr.f32.gmra.mxu0 %v381
      %v662 = vpop.f32.mrf.mxu0
      %v663 = vadd.f32 %v356, %v662
      %v664 = vpop.f32.mrf.mxu0
      %v665 = vadd.f32 %v360, %v664
      %666 = vdwg.mxu0
      %667 = vmatprep.subr.mxu0 0.0
      %668 = vmatpush1.msra.mxu0 0.0
      %669 = vmatprep.subr.mxu0 0.0
      %670 = vmatpush1.msra.mxu0 0.0
      %671 = vmatprep.subr.mxu0 0.0
      %672 = vmatpush1.msra.mxu0 0.0
      %673 = vmatprep.subr.mxu0 0.0
      %674 = vmatpush1.msra.mxu0 0.0
      %675 = vmatprep.subr.mxu0 0.0
      %676 = vmatpush1.msra.mxu0 0.0
      %677 = vmatprep.subr.mxu0 0.0
      %678 = vmatpush1.msra.mxu0 0.0
      %679 = vmatprep.subr.mxu0 0.0
      %680 = vmatpush1.msra.mxu0 0.0
      %681 = vmatprep.subr.mxu0 0.0
      %682 = vmatpush1.msra.mxu0 0.0
      %683 = vmatprep.subr.mxu0 0.0
      %684 = vmatpush1.msra.mxu0 0.0
      %685 = vmatprep.subr.mxu0 0.0
      %686 = vmatpush1.msra.mxu0 0.0
      %687 = vmatprep.subr.mxu0 0.0
      %688 = vmatpush1.msra.mxu0 0.0
      %689 = vmatprep.subr.mxu0 %v324
      %690 = vmatpush1.msra.mxu0 %v323
      %691 = vmatprep.subr.mxu0 %v314
      %692 = vmatpush1.msra.mxu0 %v313
      %693 = vmatprep.subr.mxu0 %v304
      %694 = vmatpush1.msra.mxu0 %v303
      %695 = vmatprep.subr.mxu0 %v294
      %696 = vmatpush1.msra.mxu0 %v293
      %697 = vmatprep.subr.mxu0 %v284
      %698 = vmatpush1.msra.mxu0 %v283
      %699 = vmatprep.subr.mxu0 0.0
      %700 = vmatpush2.msra.mxu0 0.0
      %701 = vmatprep.subr.mxu0 0.0
      %702 = vmatpush2.msra.mxu0 0.0
      %703 = vmatprep.subr.mxu0 0.0
      %704 = vmatpush2.msra.mxu0 0.0
      %705 = vmatprep.subr.mxu0 0.0
      %706 = vmatpush2.msra.mxu0 0.0
      %707 = vmatprep.subr.mxu0 0.0
      %708 = vmatpush2.msra.mxu0 0.0
      %709 = vmatprep.subr.mxu0 0.0
      %710 = vmatpush2.msra.mxu0 0.0
      %711 = vmatprep.subr.mxu0 0.0
      %712 = vmatpush2.msra.mxu0 0.0
      %713 = vmatprep.subr.mxu0 0.0
      %714 = vmatpush2.msra.mxu0 0.0
      %715 = vmatprep.subr.mxu0 0.0
      %716 = vmatpush2.msra.mxu0 0.0
      %717 = vmatprep.subr.mxu0 0.0
      %718 = vmatpush2.msra.mxu0 0.0
      %719 = vmatprep.subr.mxu0 0.0
      %720 = vmatpush2.msra.mxu0 0.0
      %721 = vmatprep.subr.mxu0 0.0
      %722 = vmatpush2.msra.mxu0 0.0
      %723 = vmatprep.subr.mxu0 0.0
      %724 = vmatpush2.msra.mxu0 0.0
      %725 = vmatprep.subr.mxu0 0.0
      %726 = vmatpush2.msra.mxu0 0.0
      %727 = vmatprep.subr.mxu0 0.0
      %728 = vmatpush2.msra.mxu0 0.0
      %729 = vmatprep.subr.mxu0 0.0
      %730 = vmatpush2.msra.mxu0 0.0
      %731 = vmatprep.mubr.f32.mxu0 0.0
      %732 = vmatmul.mubr.f32.gmra.mxu0 %v381
      %v733 = vpop.f32.mrf.mxu0
      %v734 = vadd.f32 %v364, %v733
      %v735 = vpop.f32.mrf.mxu0
      %v736 = vadd.f32 %v368, %v735
      %737 = vdwg.mxu0
      %v738 = vmax.f32 %v450, 0.0
      %v739 = vmax.f32 %v452, 0.0
      %v740 = vmax.f32 %v521, 0.0
      %v741 = vmax.f32 %v523, 0.0
      %v742 = vmax.f32 %v592, 0.0
      %v743 = vmax.f32 %v594, 0.0
      %v744 = vmax.f32 %v663, 0.0
      %v745 = vmax.f32 %v665, 0.0
      %v746 = vmax.f32 %v734, 0.0
      %v747 = vmax.f32 %v736, 0.0
      %v748 = vld [vmem:[%s3] sm:$0xff]
      %v749 = vld [vmem:[%s3 + $0x8] sm:$0xff]
      %v750 = vld [vmem:[%s3 + $0x10] sm:$0xff]
      %v751 = vld [vmem:[%s3 + $0x18] sm:$0xff]
      %v752 = vld [vmem:[%s3 + $0x20] sm:$0xff]
      %v753 = vld [vmem:[%s3 + $0x28] sm:$0xff]
      %v754 = vld [vmem:[%s3 + $0x30] sm:$0xff]
      %v755 = vld [vmem:[%s3 + $0x38] sm:$0xff]
      %v756 = vld [vmem:[%s3 + $0x40] sm:$0xff]
      %v757 = vld [vmem:[%s3 + $0x48] sm:$0xff]
      %v758 = vld [vmem:[%s3 + $0x50] sm:$0xff]
      %v759 = vld [vmem:[%s3 + $0x58] sm:$0xff]
      %v760 = vld [vmem:[%s3 + $0x60] sm:$0xff]
      %v761 = vld [vmem:[%s3 + $0x68] sm:$0xff]
      %v762 = vld [vmem:[%s3 + $0x70] sm:$0xff]
      %v763 = vld [vmem:[%s3 + $0x78] sm:$0xff]
      %v764 = vld [vmem:[%s3 + $0x80] sm:$0xff]
      %v765 = vld [vmem:[%s3 + $0x88] sm:$0xff]
      %v766 = vld [vmem:[%s3 + $0x90] sm:$0xff]
      %v767 = vld [vmem:[%s3 + $0x98] sm:$0xff]
      %v768 = vld [vmem:[%s3 + $0xa0] sm:$0xff]
      %v769 = vld [vmem:[%s3 + $0xa8] sm:$0xff]
      %v770 = vld [vmem:[%s3 + $0xb0] sm:$0xff]
      %v771 = vld [vmem:[%s3 + $0xb8] sm:$0xff]
      %v772 = vld [vmem:[%s3 + $0xc0] sm:$0xff]
      %v773 = vld [vmem:[%s3 + $0xc8] sm:$0xff]
      %v774 = vld [vmem:[%s3 + $0xd0] sm:$0xff]
      %v775 = vld [vmem:[%s3 + $0xd8] sm:$0xff]
      %v776 = vld [vmem:[%s3 + $0xe0] sm:$0xff]
      %v777 = vld [vmem:[%s3 + $0xe8] sm:$0xff]
      %v778 = vld [vmem:[%s3 + $0xf0] sm:$0xff]
      %v779 = vld [vmem:[%s3 + $0xf8] sm:$0xff]
      %v780 = vld [vmem:[%s3 + $0x100] sm:$0xff]
      %v781 = vld [vmem:[%s3 + $0x108] sm:$0xff]
      %v782 = vld [vmem:[%s3 + $0x110] sm:$0xff]
      %v783 = vld [vmem:[%s3 + $0x118] sm:$0xff]
      %v784 = vld [vmem:[%s3 + $0x120] sm:$0xff]
      %v785 = vld [vmem:[%s3 + $0x128] sm:$0xff]
      %v786 = vld [vmem:[%s3 + $0x130] sm:$0xff]
      %v787 = vld [vmem:[%s3 + $0x138] sm:$0xff]
      %v788 = vld [vmem:[%s3 + $0x140] sm:$0xff]
      %v789 = vld [vmem:[%s3 + $0x148] sm:$0xff]
      %v790 = vld [vmem:[%s3 + $0x150] sm:$0xff]
      %v791 = vld [vmem:[%s3 + $0x158] sm:$0xff]
      %v792 = vld [vmem:[%s3 + $0x160] sm:$0xff]
      %v793 = vld [vmem:[%s3 + $0x168] sm:$0xff]
      %v794 = vld [vmem:[%s3 + $0x170] sm:$0xff]
      %v795 = vld [vmem:[%s3 + $0x178] sm:$0xff]
      %v796 = vld [vmem:[%s3 + $0x180] sm:$0xff]
      %v797 = vld [vmem:[%s3 + $0x188] sm:$0xff]
      %v798 = vld [vmem:[%s3 + $0x190] sm:$0xff]
      %v799 = vld [vmem:[%s3 + $0x198] sm:$0xff]
      %v800 = vld [vmem:[%s3 + $0x1a0] sm:$0xff]
      %v801 = vld [vmem:[%s3 + $0x1a8] sm:$0xff]
      %v802 = vld [vmem:[%s3 + $0x1b0] sm:$0xff]
      %v803 = vld [vmem:[%s3 + $0x1b8] sm:$0xff]
      %v804 = vld [vmem:[%s3 + $0x1c0] sm:$0xff]
      %v805 = vld [vmem:[%s3 + $0x1c8] sm:$0xff]
      %v806 = vld [vmem:[%s3 + $0x1d0] sm:$0xff]
      %v807 = vld [vmem:[%s3 + $0x1d8] sm:$0xff]
      %v808 = vld [vmem:[%s3 + $0x1e0] sm:$0xff]
      %v809 = vld [vmem:[%s3 + $0x1e8] sm:$0xff]
      %v810 = vld [vmem:[%s3 + $0x1f0] sm:$0xff]
      %v811 = vld [vmem:[%s3 + $0x1f8] sm:$0xff]
      %v812 = vld [vmem:[%s3 + $0x200] sm:$0xff]
      %v813 = vld [vmem:[%s3 + $0x208] sm:$0xff]
      %v814 = vld [vmem:[%s3 + $0x210] sm:$0xff]
      %v815 = vld [vmem:[%s3 + $0x218] sm:$0xff]
      %v816 = vld [vmem:[%s3 + $0x220] sm:$0xff]
      %v817 = vld [vmem:[%s3 + $0x228] sm:$0xff]
      %v818 = vld [vmem:[%s3 + $0x230] sm:$0xff]
      %v819 = vld [vmem:[%s3 + $0x238] sm:$0xff]
      %v820 = vld [vmem:[%s3 + $0x240] sm:$0xff]
      %v821 = vld [vmem:[%s3 + $0x248] sm:$0xff]
      %v822 = vld [vmem:[%s3 + $0x250] sm:$0xff]
      %v823 = vld [vmem:[%s3 + $0x258] sm:$0xff]
      %v824 = vld [vmem:[%s3 + $0x260] sm:$0xff]
      %v825 = vld [vmem:[%s3 + $0x268] sm:$0xff]
      %v826 = vld [vmem:[%s3 + $0x270] sm:$0xff]
      %v827 = vld [vmem:[%s3 + $0x278] sm:$0xff]
      %v828 = vld [vmem:[%s3 + $0x280] sm:$0xff]
      %v829 = vld [vmem:[%s3 + $0x288] sm:$0xff]
      %v830 = vld [vmem:[%s3 + $0x290] sm:$0xff]
      %v831 = vld [vmem:[%s3 + $0x298] sm:$0xff]
      %v832 = vld [vmem:[%s3 + $0x2a0] sm:$0xff]
      %v833 = vld [vmem:[%s3 + $0x2a8] sm:$0xff]
      %v834 = vld [vmem:[%s3 + $0x2b0] sm:$0xff]
      %v835 = vld [vmem:[%s3 + $0x2b8] sm:$0xff]
      %v836 = vld [vmem:[%s3 + $0x2c0] sm:$0xff]
      %v837 = vld [vmem:[%s3 + $0x2c8] sm:$0xff]
      %v838 = vld [vmem:[%s3 + $0x2d0] sm:$0xff]
      %v839 = vld [vmem:[%s3 + $0x2d8] sm:$0xff]
      %v840 = vld [vmem:[%s3 + $0x2e0] sm:$0xff]
      %v841 = vld [vmem:[%s3 + $0x2e8] sm:$0xff]
      %v842 = vld [vmem:[%s3 + $0x2f0] sm:$0xff]
      %v843 = vld [vmem:[%s3 + $0x2f8] sm:$0xff]
      %v844 = vld [vmem:[%s3 + $0x300] sm:$0xff]
      %v845 = vld [vmem:[%s3 + $0x308] sm:$0xff]
      %v846 = vld [vmem:[%s3 + $0x310] sm:$0xff]
      %v847 = vld [vmem:[%s3 + $0x318] sm:$0xff]
      %v848 = vld [vmem:[%s3 + $0x320] sm:$0xff]
      %v849 = vld [vmem:[%s3 + $0x328] sm:$0xff]
      %v850 = vld [vmem:[%s3 + $0x330] sm:$0xff]
      %v851 = vld [vmem:[%s3 + $0x338] sm:$0xff]
      %v852 = vld [vmem:[%s3 + $0x340] sm:$0xff]
      %v853 = vld [vmem:[%s3 + $0x348] sm:$0xff]
      %v854 = vld [vmem:[%s3 + $0x350] sm:$0xff]
      %v855 = vld [vmem:[%s3 + $0x358] sm:$0xff]
      %v856 = vld [vmem:[%s3 + $0x360] sm:$0xff]
      %v857 = vld [vmem:[%s3 + $0x368] sm:$0xff]
      %v858 = vld [vmem:[%s3 + $0x370] sm:$0xff]
      %v859 = vld [vmem:[%s3 + $0x378] sm:$0xff]
      %v860 = vld [vmem:[%s3 + $0x380] sm:$0xff]
      %v861 = vld [vmem:[%s3 + $0x388] sm:$0xff]
      %v862 = vld [vmem:[%s3 + $0x390] sm:$0xff]
      %v863 = vld [vmem:[%s3 + $0x398] sm:$0xff]
      %v864 = vld [vmem:[%s3 + $0x3a0] sm:$0xff]
      %v865 = vld [vmem:[%s3 + $0x3a8] sm:$0xff]
      %v866 = vld [vmem:[%s3 + $0x3b0] sm:$0xff]
      %v867 = vld [vmem:[%s3 + $0x3b8] sm:$0xff]
      %v868 = vld [vmem:[%s3 + $0x3c0] sm:$0xff]
      %v869 = vld [vmem:[%s3 + $0x3c8] sm:$0xff]
      %v870 = vld [vmem:[%s3 + $0x3d0] sm:$0xff]
      %v871 = vld [vmem:[%s3 + $0x3d8] sm:$0xff]
      %v872 = vld [vmem:[%s3 + $0x3e0] sm:$0xff]
      %v873 = vld [vmem:[%s3 + $0x3e8] sm:$0xff]
      %v874 = vld [vmem:[%s3 + $0x3f0] sm:$0xff]
      %v875 = vld [vmem:[%s3 + $0x3f8] sm:$0xff]
      %v876 = vld [vmem:[%s3 + $0x400] sm:$0xff]
      %v877 = vld [vmem:[%s3 + $0x408] sm:$0xff]
      %v878 = vld [vmem:[%s3 + $0x410] sm:$0xff]
      %v879 = vld [vmem:[%s3 + $0x418] sm:$0xff]
      %v880 = vld [vmem:[%s3 + $0x420] sm:$0xff]
      %v881 = vld [vmem:[%s3 + $0x428] sm:$0xff]
      %v882 = vld [vmem:[%s3 + $0x430] sm:$0xff]
      %v883 = vld [vmem:[%s3 + $0x438] sm:$0xff]
      %v884 = vld [vmem:[%s3 + $0x440] sm:$0xff]
      %v885 = vld [vmem:[%s3 + $0x448] sm:$0xff]
      %v886 = vld [vmem:[%s3 + $0x450] sm:$0xff]
      %v887 = vld [vmem:[%s3 + $0x458] sm:$0xff]
      %v888 = vld [vmem:[%s3 + $0x460] sm:$0xff]
      %v889 = vld [vmem:[%s3 + $0x468] sm:$0xff]
      %v890 = vld [vmem:[%s3 + $0x470] sm:$0xff]
      %v891 = vld [vmem:[%s3 + $0x478] sm:$0xff]
      %v892 = vld [vmem:[%s3 + $0x480] sm:$0xff]
      %v893 = vld [vmem:[%s3 + $0x488] sm:$0xff]
      %v894 = vld [vmem:[%s3 + $0x490] sm:$0xff]
      %v895 = vld [vmem:[%s3 + $0x498] sm:$0xff]
      %v896 = vld [vmem:[%s3 + $0x4a0] sm:$0xff]
      %v897 = vld [vmem:[%s3 + $0x4a8] sm:$0xff]
      %v898 = vld [vmem:[%s3 + $0x4b0] sm:$0xff]
      %v899 = vld [vmem:[%s3 + $0x4b8] sm:$0xff]
      %v900 = vld [vmem:[%s3 + $0x4c0] sm:$0xff]
      %v901 = vld [vmem:[%s3 + $0x4c8] sm:$0xff]
      %v902 = vld [vmem:[%s3 + $0x4d0] sm:$0xff]
      %v903 = vld [vmem:[%s3 + $0x4d8] sm:$0xff]
      %v904 = vld [vmem:[%s3 + $0x4e0] sm:$0xff]
      %v905 = vld [vmem:[%s3 + $0x4e8] sm:$0xff]
      %v906 = vld [vmem:[%s3 + $0x4f0] sm:$0xff]
      %v907 = vld [vmem:[%s3 + $0x4f8] sm:$0xff]
      %v908 = vld [vmem:[%s4] sm:$0x1]
      %v910 = vlaneseq
      %v911 = vshrl.u32 %v910, 7
      %v912 = vsub.s32 0, %v911
      %v913 = vrot.slane %v908, %v912
      %915 = vmatprep.subr.mxu0 0.0
      %916 = vmatpush1.msra.mxu0 %v763
      %917 = vmatprep.subr.mxu0 0.0
      %918 = vmatpush1.msra.mxu0 %v762
      %919 = vmatprep.subr.mxu0 0.0
      %920 = vmatpush1.msra.mxu0 %v761
      %921 = vmatprep.subr.mxu0 0.0
      %922 = vmatpush1.msra.mxu0 %v760
      %923 = vmatprep.subr.mxu0 0.0
      %924 = vmatpush1.msra.mxu0 %v759
      %925 = vmatprep.subr.mxu0 0.0
      %926 = vmatpush1.msra.mxu0 %v758
      %927 = vmatprep.subr.mxu0 0.0
      %928 = vmatpush1.msra.mxu0 %v757
      %929 = vmatprep.subr.mxu0 0.0
      %930 = vmatpush1.msra.mxu0 %v756
      %931 = vmatprep.subr.mxu0 0.0
      %932 = vmatpush1.msra.mxu0 %v755
      %933 = vmatprep.subr.mxu0 0.0
      %934 = vmatpush1.msra.mxu0 %v754
      %935 = vmatprep.subr.mxu0 0.0
      %936 = vmatpush1.msra.mxu0 %v753
      %937 = vmatprep.subr.mxu0 0.0
      %938 = vmatpush1.msra.mxu0 %v752
      %939 = vmatprep.subr.mxu0 0.0
      %940 = vmatpush1.msra.mxu0 %v751
      %941 = vmatprep.subr.mxu0 0.0
      %942 = vmatpush1.msra.mxu0 %v750
      %943 = vmatprep.subr.mxu0 0.0
      %944 = vmatpush1.msra.mxu0 %v749
      %945 = vmatprep.subr.mxu0 0.0
      %946 = vmatpush1.msra.mxu0 %v748
      %947 = vmatprep.subr.mxu0 0.0
      %948 = vmatpush2.msra.mxu0 %v779
      %949 = vmatprep.subr.mxu0 0.0
      %950 = vmatpush2.msra.mxu0 %v778
      %951 = vmatprep.subr.mxu0 0.0
      %952 = vmatpush2.msra.mxu0 %v777
      %953 = vmatprep.subr.mxu0 0.0
      %954 = vmatpush2.msra.mxu0 %v776
      %955 = vmatprep.subr.mxu0 0.0
      %956 = vmatpush2.msra.mxu0 %v775
      %957 = vmatprep.subr.mxu0 0.0
      %958 = vmatpush2.msra.mxu0 %v774
      %959 = vmatprep.subr.mxu0 0.0
      %960 = vmatpush2.msra.mxu0 %v773
      %961 = vmatprep.subr.mxu0 0.0
      %962 = vmatpush2.msra.mxu0 %v772
      %963 = vmatprep.subr.mxu0 0.0
      %964 = vmatpush2.msra.mxu0 %v771
      %965 = vmatprep.subr.mxu0 0.0
      %966 = vmatpush2.msra.mxu0 %v770
      %967 = vmatprep.subr.mxu0 0.0
      %968 = vmatpush2.msra.mxu0 %v769
      %969 = vmatprep.subr.mxu0 0.0
      %970 = vmatpush2.msra.mxu0 %v768
      %971 = vmatprep.subr.mxu0 0.0
      %972 = vmatpush2.msra.mxu0 %v767
      %973 = vmatprep.subr.mxu0 0.0
      %974 = vmatpush2.msra.mxu0 %v766
      %975 = vmatprep.subr.mxu0 0.0
      %976 = vmatpush2.msra.mxu0 %v765
      %977 = vmatprep.subr.mxu0 0.0
      %978 = vmatpush2.msra.mxu0 %v764
      %979 = vmatprep.mubr.f32.mxu0 %v739
      %980 = vmatmul.mubr.f32.gmra.mxu0 %v738
      %v981 = vpop.f32.mrf.mxu0
      %v982 = vadd.f32 %v913, %v981
      %v983 = vpop.f32.mrf.mxu0
      %984 = vdwg.mxu0
      %985 = vmatprep.subr.mxu0 0.0
      %986 = vmatpush1.msra.mxu0 %v795
      %987 = vmatprep.subr.mxu0 0.0
      %988 = vmatpush1.msra.mxu0 %v794
      %989 = vmatprep.subr.mxu0 0.0
      %990 = vmatpush1.msra.mxu0 %v793
      %991 = vmatprep.subr.mxu0 0.0
      %992 = vmatpush1.msra.mxu0 %v792
      %993 = vmatprep.subr.mxu0 0.0
      %994 = vmatpush1.msra.mxu0 %v791
      %995 = vmatprep.subr.mxu0 0.0
      %996 = vmatpush1.msra.mxu0 %v790
      %997 = vmatprep.subr.mxu0 0.0
      %998 = vmatpush1.msra.mxu0 %v789
      %999 = vmatprep.subr.mxu0 0.0
      %1000 = vmatpush1.msra.mxu0 %v788
      %1001 = vmatprep.subr.mxu0 0.0
      %1002 = vmatpush1.msra.mxu0 %v787
      %1003 = vmatprep.subr.mxu0 0.0
      %1004 = vmatpush1.msra.mxu0 %v786
      %1005 = vmatprep.subr.mxu0 0.0
      %1006 = vmatpush1.msra.mxu0 %v785
      %1007 = vmatprep.subr.mxu0 0.0
      %1008 = vmatpush1.msra.mxu0 %v784
      %1009 = vmatprep.subr.mxu0 0.0
      %1010 = vmatpush1.msra.mxu0 %v783
      %1011 = vmatprep.subr.mxu0 0.0
      %1012 = vmatpush1.msra.mxu0 %v782
      %1013 = vmatprep.subr.mxu0 0.0
      %1014 = vmatpush1.msra.mxu0 %v781
      %1015 = vmatprep.subr.mxu0 0.0
      %1016 = vmatpush1.msra.mxu0 %v780
      %1017 = vmatprep.subr.mxu0 0.0
      %1018 = vmatpush2.msra.mxu0 %v811
      %1019 = vmatprep.subr.mxu0 0.0
      %1020 = vmatpush2.msra.mxu0 %v810
      %1021 = vmatprep.subr.mxu0 0.0
      %1022 = vmatpush2.msra.mxu0 %v809
      %1023 = vmatprep.subr.mxu0 0.0
      %1024 = vmatpush2.msra.mxu0 %v808
      %1025 = vmatprep.subr.mxu0 0.0
      %1026 = vmatpush2.msra.mxu0 %v807
      %1027 = vmatprep.subr.mxu0 0.0
      %1028 = vmatpush2.msra.mxu0 %v806
      %1029 = vmatprep.subr.mxu0 0.0
      %1030 = vmatpush2.msra.mxu0 %v805
      %1031 = vmatprep.subr.mxu0 0.0
      %1032 = vmatpush2.msra.mxu0 %v804
      %1033 = vmatprep.subr.mxu0 0.0
      %1034 = vmatpush2.msra.mxu0 %v803
      %1035 = vmatprep.subr.mxu0 0.0
      %1036 = vmatpush2.msra.mxu0 %v802
      %1037 = vmatprep.subr.mxu0 0.0
      %1038 = vmatpush2.msra.mxu0 %v801
      %1039 = vmatprep.subr.mxu0 0.0
      %1040 = vmatpush2.msra.mxu0 %v800
      %1041 = vmatprep.subr.mxu0 0.0
      %1042 = vmatpush2.msra.mxu0 %v799
      %1043 = vmatprep.subr.mxu0 0.0
      %1044 = vmatpush2.msra.mxu0 %v798
      %1045 = vmatprep.subr.mxu0 0.0
      %1046 = vmatpush2.msra.mxu0 %v797
      %1047 = vmatprep.subr.mxu0 0.0
      %1048 = vmatpush2.msra.mxu0 %v796
      %1049 = vmatprep.mubr.f32.mxu0 %v741
      %1050 = vmatmul.mubr.f32.gmra.mxu0 %v740
      %v1051 = vpop.f32.mrf.mxu0
      %v1052 = vadd.f32 %v982, %v1051
      %v1053 = vpop.f32.mrf.mxu0
      %1054 = vdwg.mxu0
      %1055 = vmatprep.subr.mxu0 0.0
      %1056 = vmatpush1.msra.mxu0 %v827
      %1057 = vmatprep.subr.mxu0 0.0
      %1058 = vmatpush1.msra.mxu0 %v826
      %1059 = vmatprep.subr.mxu0 0.0
      %1060 = vmatpush1.msra.mxu0 %v825
      %1061 = vmatprep.subr.mxu0 0.0
      %1062 = vmatpush1.msra.mxu0 %v824
      %1063 = vmatprep.subr.mxu0 0.0
      %1064 = vmatpush1.msra.mxu0 %v823
      %1065 = vmatprep.subr.mxu0 0.0
      %1066 = vmatpush1.msra.mxu0 %v822
      %1067 = vmatprep.subr.mxu0 0.0
      %1068 = vmatpush1.msra.mxu0 %v821
      %1069 = vmatprep.subr.mxu0 0.0
      %1070 = vmatpush1.msra.mxu0 %v820
      %1071 = vmatprep.subr.mxu0 0.0
      %1072 = vmatpush1.msra.mxu0 %v819
      %1073 = vmatprep.subr.mxu0 0.0
      %1074 = vmatpush1.msra.mxu0 %v818
      %1075 = vmatprep.subr.mxu0 0.0
      %1076 = vmatpush1.msra.mxu0 %v817
      %1077 = vmatprep.subr.mxu0 0.0
      %1078 = vmatpush1.msra.mxu0 %v816
      %1079 = vmatprep.subr.mxu0 0.0
      %1080 = vmatpush1.msra.mxu0 %v815
      %1081 = vmatprep.subr.mxu0 0.0
      %1082 = vmatpush1.msra.mxu0 %v814
      %1083 = vmatprep.subr.mxu0 0.0
      %1084 = vmatpush1.msra.mxu0 %v813
      %1085 = vmatprep.subr.mxu0 0.0
      %1086 = vmatpush1.msra.mxu0 %v812
      %1087 = vmatprep.subr.mxu0 0.0
      %1088 = vmatpush2.msra.mxu0 %v843
      %1089 = vmatprep.subr.mxu0 0.0
      %1090 = vmatpush2.msra.mxu0 %v842
      %1091 = vmatprep.subr.mxu0 0.0
      %1092 = vmatpush2.msra.mxu0 %v841
      %1093 = vmatprep.subr.mxu0 0.0
      %1094 = vmatpush2.msra.mxu0 %v840
      %1095 = vmatprep.subr.mxu0 0.0
      %1096 = vmatpush2.msra.mxu0 %v839
      %1097 = vmatprep.subr.mxu0 0.0
      %1098 = vmatpush2.msra.mxu0 %v838
      %1099 = vmatprep.subr.mxu0 0.0
      %1100 = vmatpush2.msra.mxu0 %v837
      %1101 = vmatprep.subr.mxu0 0.0
      %1102 = vmatpush2.msra.mxu0 %v836
      %1103 = vmatprep.subr.mxu0 0.0
      %1104 = vmatpush2.msra.mxu0 %v835
      %1105 = vmatprep.subr.mxu0 0.0
      %1106 = vmatpush2.msra.mxu0 %v834
      %1107 = vmatprep.subr.mxu0 0.0
      %1108 = vmatpush2.msra.mxu0 %v833
      %1109 = vmatprep.subr.mxu0 0.0
      %1110 = vmatpush2.msra.mxu0 %v832
      %1111 = vmatprep.subr.mxu0 0.0
      %1112 = vmatpush2.msra.mxu0 %v831
      %1113 = vmatprep.subr.mxu0 0.0
      %1114 = vmatpush2.msra.mxu0 %v830
      %1115 = vmatprep.subr.mxu0 0.0
      %1116 = vmatpush2.msra.mxu0 %v829
      %1117 = vmatprep.subr.mxu0 0.0
      %1118 = vmatpush2.msra.mxu0 %v828
      %1119 = vmatprep.mubr.f32.mxu0 %v743
      %1120 = vmatmul.mubr.f32.gmra.mxu0 %v742
      %v1121 = vpop.f32.mrf.mxu0
      %v1122 = vadd.f32 %v1052, %v1121
      %v1123 = vpop.f32.mrf.mxu0
      %1124 = vdwg.mxu0
      %1125 = vmatprep.subr.mxu0 0.0
      %1126 = vmatpush1.msra.mxu0 %v859
      %1127 = vmatprep.subr.mxu0 0.0
      %1128 = vmatpush1.msra.mxu0 %v858
      %1129 = vmatprep.subr.mxu0 0.0
      %1130 = vmatpush1.msra.mxu0 %v857
      %1131 = vmatprep.subr.mxu0 0.0
      %1132 = vmatpush1.msra.mxu0 %v856
      %1133 = vmatprep.subr.mxu0 0.0
      %1134 = vmatpush1.msra.mxu0 %v855
      %1135 = vmatprep.subr.mxu0 0.0
      %1136 = vmatpush1.msra.mxu0 %v854
      %1137 = vmatprep.subr.mxu0 0.0
      %1138 = vmatpush1.msra.mxu0 %v853
      %1139 = vmatprep.subr.mxu0 0.0
      %1140 = vmatpush1.msra.mxu0 %v852
      %1141 = vmatprep.subr.mxu0 0.0
      %1142 = vmatpush1.msra.mxu0 %v851
      %1143 = vmatprep.subr.mxu0 0.0
      %1144 = vmatpush1.msra.mxu0 %v850
      %1145 = vmatprep.subr.mxu0 0.0
      %1146 = vmatpush1.msra.mxu0 %v849
      %1147 = vmatprep.subr.mxu0 0.0
      %1148 = vmatpush1.msra.mxu0 %v848
      %1149 = vmatprep.subr.mxu0 0.0
      %1150 = vmatpush1.msra.mxu0 %v847
      %1151 = vmatprep.subr.mxu0 0.0
      %1152 = vmatpush1.msra.mxu0 %v846
      %1153 = vmatprep.subr.mxu0 0.0
      %1154 = vmatpush1.msra.mxu0 %v845
      %1155 = vmatprep.subr.mxu0 0.0
      %1156 = vmatpush1.msra.mxu0 %v844
      %1157 = vmatprep.subr.mxu0 0.0
      %1158 = vmatpush2.msra.mxu0 %v875
      %1159 = vmatprep.subr.mxu0 0.0
      %1160 = vmatpush2.msra.mxu0 %v874
      %1161 = vmatprep.subr.mxu0 0.0
      %1162 = vmatpush2.msra.mxu0 %v873
      %1163 = vmatprep.subr.mxu0 0.0
      %1164 = vmatpush2.msra.mxu0 %v872
      %1165 = vmatprep.subr.mxu0 0.0
      %1166 = vmatpush2.msra.mxu0 %v871
      %1167 = vmatprep.subr.mxu0 0.0
      %1168 = vmatpush2.msra.mxu0 %v870
      %1169 = vmatprep.subr.mxu0 0.0
      %1170 = vmatpush2.msra.mxu0 %v869
      %1171 = vmatprep.subr.mxu0 0.0
      %1172 = vmatpush2.msra.mxu0 %v868
      %1173 = vmatprep.subr.mxu0 0.0
      %1174 = vmatpush2.msra.mxu0 %v867
      %1175 = vmatprep.subr.mxu0 0.0
      %1176 = vmatpush2.msra.mxu0 %v866
      %1177 = vmatprep.subr.mxu0 0.0
      %1178 = vmatpush2.msra.mxu0 %v865
      %1179 = vmatprep.subr.mxu0 0.0
      %1180 = vmatpush2.msra.mxu0 %v864
      %1181 = vmatprep.subr.mxu0 0.0
      %1182 = vmatpush2.msra.mxu0 %v863
      %1183 = vmatprep.subr.mxu0 0.0
      %1184 = vmatpush2.msra.mxu0 %v862
      %1185 = vmatprep.subr.mxu0 0.0
      %1186 = vmatpush2.msra.mxu0 %v861
      %1187 = vmatprep.subr.mxu0 0.0
      %1188 = vmatpush2.msra.mxu0 %v860
      %1189 = vmatprep.mubr.f32.mxu0 %v745
      %1190 = vmatmul.mubr.f32.gmra.mxu0 %v744
      %v1191 = vpop.f32.mrf.mxu0
      %v1192 = vadd.f32 %v1122, %v1191
      %v1193 = vpop.f32.mrf.mxu0
      %1194 = vdwg.mxu0
      %1195 = vmatprep.subr.mxu0 0.0
      %1196 = vmatpush1.msra.mxu0 %v891
      %1197 = vmatprep.subr.mxu0 0.0
      %1198 = vmatpush1.msra.mxu0 %v890
      %1199 = vmatprep.subr.mxu0 0.0
      %1200 = vmatpush1.msra.mxu0 %v889
      %1201 = vmatprep.subr.mxu0 0.0
      %1202 = vmatpush1.msra.mxu0 %v888
      %1203 = vmatprep.subr.mxu0 0.0
      %1204 = vmatpush1.msra.mxu0 %v887
      %1205 = vmatprep.subr.mxu0 0.0
      %1206 = vmatpush1.msra.mxu0 %v886
      %1207 = vmatprep.subr.mxu0 0.0
      %1208 = vmatpush1.msra.mxu0 %v885
      %1209 = vmatprep.subr.mxu0 0.0
      %1210 = vmatpush1.msra.mxu0 %v884
      %1211 = vmatprep.subr.mxu0 0.0
      %1212 = vmatpush1.msra.mxu0 %v883
      %1213 = vmatprep.subr.mxu0 0.0
      %1214 = vmatpush1.msra.mxu0 %v882
      %1215 = vmatprep.subr.mxu0 0.0
      %1216 = vmatpush1.msra.mxu0 %v881
      %1217 = vmatprep.subr.mxu0 0.0
      %1218 = vmatpush1.msra.mxu0 %v880
      %1219 = vmatprep.subr.mxu0 0.0
      %1220 = vmatpush1.msra.mxu0 %v879
      %1221 = vmatprep.subr.mxu0 0.0
      %1222 = vmatpush1.msra.mxu0 %v878
      %1223 = vmatprep.subr.mxu0 0.0
      %1224 = vmatpush1.msra.mxu0 %v877
      %1225 = vmatprep.subr.mxu0 0.0
      %1226 = vmatpush1.msra.mxu0 %v876
      %1227 = vmatprep.subr.mxu0 0.0
      %1228 = vmatpush2.msra.mxu0 %v907
      %1229 = vmatprep.subr.mxu0 0.0
      %1230 = vmatpush2.msra.mxu0 %v906
      %1231 = vmatprep.subr.mxu0 0.0
      %1232 = vmatpush2.msra.mxu0 %v905
      %1233 = vmatprep.subr.mxu0 0.0
      %1234 = vmatpush2.msra.mxu0 %v904
      %1235 = vmatprep.subr.mxu0 0.0
      %1236 = vmatpush2.msra.mxu0 %v903
      %1237 = vmatprep.subr.mxu0 0.0
      %1238 = vmatpush2.msra.mxu0 %v902
      %1239 = vmatprep.subr.mxu0 0.0
      %1240 = vmatpush2.msra.mxu0 %v901
      %1241 = vmatprep.subr.mxu0 0.0
      %1242 = vmatpush2.msra.mxu0 %v900
      %1243 = vmatprep.subr.mxu0 0.0
      %1244 = vmatpush2.msra.mxu0 %v899
      %1245 = vmatprep.subr.mxu0 0.0
      %1246 = vmatpush2.msra.mxu0 %v898
      %1247 = vmatprep.subr.mxu0 0.0
      %1248 = vmatpush2.msra.mxu0 %v897
      %1249 = vmatprep.subr.mxu0 0.0
      %1250 = vmatpush2.msra.mxu0 %v896
      %1251 = vmatprep.subr.mxu0 0.0
      %1252 = vmatpush2.msra.mxu0 %v895
      %1253 = vmatprep.subr.mxu0 0.0
      %1254 = vmatpush2.msra.mxu0 %v894
      %1255 = vmatprep.subr.mxu0 0.0
      %1256 = vmatpush2.msra.mxu0 %v893
      %1257 = vmatprep.subr.mxu0 0.0
      %1258 = vmatpush2.msra.mxu0 %v892
      %1259 = vmatprep.mubr.f32.mxu0 %v747
      %1260 = vmatmul.mubr.f32.gmra.mxu0 %v746
      %v1261 = vpop.f32.mrf.mxu0
      %v1262 = vadd.f32 %v1192, %v1261
      %v1263 = vpop.f32.mrf.mxu0
      %1264 = vdwg.mxu0
      %v1265 = vmax.f32 %v1262, 0.0
      %v1266 = vld [vmem:[%s5] sm:$0xff]
      %v1267 = vld [vmem:[%s5 + $0x8] sm:$0xff]
      %v1268 = vld [vmem:[%s5 + $0x10] sm:$0xff]
      %v1269 = vld [vmem:[%s5 + $0x18] sm:$0xff]
      %v1270 = vld [vmem:[%s5 + $0x20] sm:$0xff]
      %v1271 = vld [vmem:[%s5 + $0x28] sm:$0xff]
      %v1272 = vld [vmem:[%s5 + $0x30] sm:$0xff]
      %v1273 = vld [vmem:[%s5 + $0x38] sm:$0xff]
      %v1274 = vld [vmem:[%s6] sm:$0x1]
      %v1276 = vlaneseq
      %v1277 = vshrl.u32 %v1276, 7
      %v1278 = vsub.s32 0, %v1277
      %v1279 = vrot.slane %v1274, %v1278
      %vm1281 = vcmask 523264
      %v1283 = vsel %vm1281, %v1265, 0
      %1285 = vmatprep.subr.mxu0 0.0
      %1286 = vmatpush1.msra.mxu0 0.0
      %1287 = vmatprep.subr.mxu0 0.0
      %1288 = vmatpush1.msra.mxu0 0.0
      %1289 = vmatprep.subr.mxu0 0.0
      %1290 = vmatpush1.msra.mxu0 0.0
      %1291 = vmatprep.subr.mxu0 0.0
      %1292 = vmatpush1.msra.mxu0 0.0
      %1293 = vmatprep.subr.mxu0 0.0
      %1294 = vmatpush1.msra.mxu0 0.0
      %1295 = vmatprep.subr.mxu0 0.0
      %1296 = vmatpush1.msra.mxu0 0.0
      %1297 = vmatprep.subr.mxu0 0.0
      %1298 = vmatpush1.msra.mxu0 0.0
      %1299 = vmatprep.subr.mxu0 0.0
      %1300 = vmatpush1.msra.mxu0 0.0
      %1301 = vmatprep.subr.mxu0 0.0
      %1302 = vmatpush1.msra.mxu0 %v1273
      %1303 = vmatprep.subr.mxu0 0.0
      %1304 = vmatpush1.msra.mxu0 %v1272
      %1305 = vmatprep.subr.mxu0 0.0
      %1306 = vmatpush1.msra.mxu0 %v1271
      %1307 = vmatprep.subr.mxu0 0.0
      %1308 = vmatpush1.msra.mxu0 %v1270
      %1309 = vmatprep.subr.mxu0 0.0
      %1310 = vmatpush1.msra.mxu0 %v1269
      %1311 = vmatprep.subr.mxu0 0.0
      %1312 = vmatpush1.msra.mxu0 %v1268
      %1313 = vmatprep.subr.mxu0 0.0
      %1314 = vmatpush1.msra.mxu0 %v1267
      %1315 = vmatprep.subr.mxu0 0.0
      %1316 = vmatpush1.msra.mxu0 %v1266
      %1317 = vmatprep.subr.mxu0 0.0
      %1318 = vmatpush2.msra.mxu0 0.0
      %1319 = vmatprep.subr.mxu0 0.0
      %1320 = vmatpush2.msra.mxu0 0.0
      %1321 = vmatprep.subr.mxu0 0.0
      %1322 = vmatpush2.msra.mxu0 0.0
      %1323 = vmatprep.subr.mxu0 0.0
      %1324 = vmatpush2.msra.mxu0 0.0
      %1325 = vmatprep.subr.mxu0 0.0
      %1326 = vmatpush2.msra.mxu0 0.0
      %1327 = vmatprep.subr.mxu0 0.0
      %1328 = vmatpush2.msra.mxu0 0.0
      %1329 = vmatprep.subr.mxu0 0.0
      %1330 = vmatpush2.msra.mxu0 0.0
      %1331 = vmatprep.subr.mxu0 0.0
      %1332 = vmatpush2.msra.mxu0 0.0
      %1333 = vmatprep.subr.mxu0 0.0
      %1334 = vmatpush2.msra.mxu0 0.0
      %1335 = vmatprep.subr.mxu0 0.0
      %1336 = vmatpush2.msra.mxu0 0.0
      %1337 = vmatprep.subr.mxu0 0.0
      %1338 = vmatpush2.msra.mxu0 0.0
      %1339 = vmatprep.subr.mxu0 0.0
      %1340 = vmatpush2.msra.mxu0 0.0
      %1341 = vmatprep.subr.mxu0 0.0
      %1342 = vmatpush2.msra.mxu0 0.0
      %1343 = vmatprep.subr.mxu0 0.0
      %1344 = vmatpush2.msra.mxu0 0.0
      %1345 = vmatprep.subr.mxu0 0.0
      %1346 = vmatpush2.msra.mxu0 0.0
      %1347 = vmatprep.subr.mxu0 0.0
      %1348 = vmatpush2.msra.mxu0 0.0
      %1349 = vmatprep.mubr.f32.mxu0 0.0
      %1350 = vmatmul.mubr.f32.gmra.mxu0 %v1283
      %v1351 = vpop.f32.mrf.mxu0
      %v1352 = vadd.f32 %v1279, %v1351
      %v1353 = vpop.f32.mrf.mxu0
      %1354 = vdwg.mxu0
      %vm1355 = vcmask 15360
      %1356 = vst.msk [vmem:[%s273] sm:$0xff] %vm1355, %v1352
      %p1357 = scmp.lt.s32.totalorder %s18, 1
      %s1358 = scalar_select %p1357, %s18, 1
      %s1359 = smul.addr %s1358, 8
      %s1360 = scalar_lea.vmem %s7, %s1359
      // Predicated region
      $region49: #{cnn2d_forward.1} parent=47 // pred_check
        %p1361 = pneg %p188
      $region50: #{cnn2d_forward.1} parent=47 // pred_check_branch
        %1363 = sbr.rel (%p1361) target = $region52
      $region51: #{cnn2d_forward.1} parent=47 // pred_region
        _
      $region52: #{cnn2d_forward.1} parent=47 // pred_fallthru
        _
    $region48: #{cnn2d_forward.1} parent=5 // pred_fallthru
      _
    %p1364 = scmp.le.s32.totalorder 2, %s13
    // Predicated region
    $region53: #{cnn2d_forward.1} parent=5 // pred_check
      %p1365 = pneg %p1364
    $region54: #{cnn2d_forward.1} parent=5 // pred_check_branch
      %1367 = sbr.rel (%p1365) target = $region56
    $region55: #{cnn2d_forward.1} parent=5 // pred_region
      %s1368 = ssub.s32 %s13, 2
      // Predicated region
      $region57: #{cnn2d_forward.1} parent=55 // pred_check
        %p1369 = pneg %p194
      $region58: #{cnn2d_forward.1} parent=55 // pred_check_branch
        %1371 = sbr.rel (%p1369) target = $region60
      $region59: #{cnn2d_forward.1} parent=55 // pred_region
        %p1372 = scmp.lt.s32.totalorder %s19, 1
        %s1373 = scalar_select %p1372, %s19, 1
        %s1374 = smul.addr %s1373, 8
        %s1375 = scalar_lea.vmem %s7, %s1374
      $region60: #{cnn2d_forward.1} parent=55 // pred_fallthru
        _
    $region56: #{cnn2d_forward.1} parent=5 // pred_fallthru
      _
  $region6: #{cnn2d_forward.1} parent=0 // loop_footer
    %s17 = sadd.s32 1, %s13
  $region7: #{cnn2d_forward.1} parent=0 // loop_footer_branch
    %12 = sbr.rel target = $region3
  $region8: #{cnn2d_forward.1} parent=0 // loop_exit
    _

</llo_original>
